<compile_context>
chip_gen: v5e
topology: v5e:2x2
jax: 0.10.0
libtpu: 0.0.40
codegen_flags: <defaults>
</compile_context>

<pallas_src>
import jax
import jax.numpy as jnp
import numpy as np
from jax import lax
from jax.experimental import pallas as pl
from jax.experimental.pallas import tpu as pltpu


# ---------------------------------------------------------------------------
# Small compile-time constants (numpy) and weight re-arrangement (run once)
# ---------------------------------------------------------------------------
def _reflect(p, n):
    if p < 0:
        return -p
    if p >= n:
        return 2 * n - 2 - p
    return p


def _col_select(W2):
    """P[dw, win, wout] = 1 iff win == reflect(wout + dw - 1)  (reflect-W taps)."""
    p = np.zeros((3, W2, W2), np.float32)
    for dw in range(3):
        for wo in range(W2):
            p[dw, _reflect(wo + dw - 1, W2), wo] = 1.0
    return p


def _banded_conv_matrices(w_oihw, pcols):
    """M[dh]: (W2*Ci, W2*Co) banded matrix folding the dw taps, the channel
    contraction and the reflect-W boundary into one lane-space matmul operand."""
    m = jnp.einsum("dxy,oikd->kxiyo", pcols, w_oihw)   # (3, W2, Ci, W2, Co)
    _, x, i, y, o = m.shape
    return m.reshape(3, x * i, y * o)


def prepare_upsample_operands(params, H, W):
    """Precompute all weight-derived matmul operands once per weight set
    (hoisted out of the per-call path)."""
    wt, bt = params["wt"], params["bt"]
    Cin, Ch = wt.shape[0], wt.shape[1]
    Co = params["w1"].shape[0]
    W2 = 2 * W

    # ConvTranspose2d(k=2, s=2) as two lane-space matrices (even / odd output rows):
    #   T[kh][w*Cin + ci, wout*Ch + cm] = wt[ci, cm, kh, kw], wout = 2w + kw
    eye = np.eye(W, dtype=np.float32)
    t = jnp.einsum("wv,ickm->kwivmc", eye, wt).reshape(2, W * Cin, W2 * Ch)
    t0, t1 = t[0], t[1]
    bt_row = jnp.tile(bt, W2).reshape(1, W2 * Ch)

    pcols = _col_select(W2)
    m1 = _banded_conv_matrices(params["w1"], pcols)     # (3, W2*Ch, W2*Co)
    m2 = _banded_conv_matrices(params["w2"], pcols)     # (3, W2*Co, W2*Co)

    # Fold ConvTranspose into conv1 and fuse the 3 row taps + both row parities
    # into ONE (3*W*Cin, 2*W2*Co) weight matrix.  In terms of the input rows x,
    # x_up = x[h-1], x_dn = x[h+1] (reflect at image edges):
    #   even output rows (r=2h):   taps use [y1[h-1], y0[h], y1[h]]
    #   odd  output rows (r=2h+1): taps use [y0[h],  y1[h], y0[h+1]]
    zero = jnp.zeros((W * Cin, W2 * Co), jnp.float32)
    w1_even = jnp.concatenate([t1 @ m1[0], t0 @ m1[1] + t1 @ m1[2], zero], axis=0)
    w1_odd = jnp.concatenate([zero, t0 @ m1[0] + t1 @ m1[1], t0 @ m1[2]], axis=0)
    w1_cat = jnp.concatenate([w1_even, w1_odd], axis=1)          # (3*W*Cin, 2*W2*Co)
    bias1 = bt_row @ (m1[0] + m1[1] + m1[2])                     # (1, W2*Co)
    bias1_cat = jnp.concatenate([bias1, bias1], axis=1)          # (1, 2*W2*Co)

    m2_stack = m2.reshape(3 * W2 * Co, W2 * Co)                  # (3*W2*Co, W2*Co)

    # Channel-grouping matrices for the (row-reduced) BN statistics: lane % Co.
    gs1 = jnp.asarray(np.kron(np.ones((2 * W2, 2 * W2), np.float32),
                              np.eye(Co, dtype=np.float32)))     # (2*W2*Co, 2*W2*Co)
    gs2 = jnp.asarray(np.kron(np.ones((W2, W2), np.float32),
                              np.eye(Co, dtype=np.float32)))     # (W2*Co, W2*Co)

    return {
        "w1_cat": w1_cat.astype(jnp.bfloat16),
        "bias1_cat": bias1_cat,
        "m2_stack": m2_stack.astype(jnp.bfloat16),
        "gs1": gs1,
        "gs2": gs2,
        "g1_row": jnp.tile(params["g1"], 2 * W2).reshape(1, 2 * W2 * Co),
        "b1_row": jnp.tile(params["b1"], 2 * W2).reshape(1, 2 * W2 * Co),
        "g2_row": jnp.tile(params["g2"], W2).reshape(1, W2 * Co),
        "b2_row": jnp.tile(params["b2"], W2).reshape(1, W2 * Co),
    }


# ---------------------------------------------------------------------------
# Fused forward
# ---------------------------------------------------------------------------
def upsample_forward(x_nchw, ops, *, eps=1e-5):
    """UpSample.forward == ConvTranspose2d(Cin, Cin//2, 2, 2) -> DoubleConv,
    executed as one fused, fully VMEM-resident Pallas kernel."""
    N, Cin, H, W = x_nchw.shape
    H2, W2 = 2 * H, 2 * W
    Co = ops["m2_stack"].shape[1] // W2
    NH = N * H
    hw = W2 * Co
    inv_cnt = 1.0 / float(N * H2 * W2)   # BN per-channel element count

    # layout plumbing (tiny XLA glue): rows = N*H, lanes = W*Cin
    x2d = jnp.transpose(x_nchw, (0, 2, 3, 1)).reshape(NH, W * Cin)

    def kernel(x_ref, w1_ref, bias1_ref, m2_ref, gs1_ref, gs2_ref,
               g1_ref, b1_ref, g2_ref, b2_ref, o_ref):
        f32, bf16 = jnp.float32, jnp.bfloat16

        def mm(a, b):
            return jnp.dot(a, b, preferred_element_type=f32)

        # per-image +/-1 row shifts with reflect at the image edges:
        # XLU sublane roll + boundary fix-up (also blocks cross-image leakage).
        row = lax.broadcasted_iota(jnp.int32, (NH, 1), 0) % H
        is_first = row == 0
        is_last = row == H - 1

        def shift_up(a):      # a[h-1];  a[0]   at h == 0     (reflect)
            return jnp.where(is_first, a, pltpu.roll(a, 1, 0))

        def shift_dn(a):      # a[h+1];  a[H-1] at h == H-1   (reflect)
            return jnp.where(is_last, a, pltpu.roll(a, NH - 1, 0))

        def bn_relu(planes, gs, g_row, b_row):
            # training-mode BatchNorm (batch stats, biased var) + ReLU, all f32.
            # Rows reduced FIRST, then the tiny (1,K)x(K,K) channel-group matmul.
            rs = planes[0] * 0.0
            rsq = rs
            rs = jnp.zeros_like(jnp.sum(planes[0], axis=0, keepdims=True))
            rsq = jnp.zeros_like(rs)
            for a in planes:
                rs = rs + jnp.sum(a, axis=0, keepdims=True)
                rsq = rsq + jnp.sum(a * a, axis=0, keepdims=True)
            mean = mm(rs, gs) * inv_cnt
            var = mm(rsq, gs) * inv_cnt - mean * mean
            scale = g_row * lax.rsqrt(var + eps)
            shift = b_row - mean * scale
            return [jnp.maximum(a * scale + shift, 0.0) for a in planes]

        # --- ConvTranspose(k=2,s=2) + Conv1(3x3 reflect), both row parities and
        #     all 3 row taps folded into ONE bf16 matmul (K = 3*W*Cin, 256 lanes out)
        x = x_ref[...]                                            # (NH, W*Cin) f32
        lhs1 = jnp.concatenate([shift_up(x), x, shift_dn(x)], axis=1).astype(bf16)
        a1 = mm(lhs1, w1_ref[...]) + bias1_ref[...]               # (NH, 2*W2*Co) f32
        (h1,) = bn_relu([a1], gs1_ref[...], g1_ref[...], b1_ref[...])

        # --- Conv2 (3x3 reflect) on the interleaved image, per output-row parity
        h1e, h1o = h1[:, :hw], h1[:, hw:]                         # even / odd rows
        lhs2e = jnp.concatenate([shift_up(h1o), h1e, h1o], axis=1).astype(bf16)
        lhs2o = jnp.concatenate([h1e, h1o, shift_dn(h1e)], axis=1).astype(bf16)
        a2e = mm(lhs2e, m2_ref[...])                              # (NH, W2*Co) f32
        a2o = mm(lhs2o, m2_ref[...])
        h2e, h2o = bn_relu([a2e, a2o], gs2_ref[...], g2_ref[...], b2_ref[...])

        o_ref[:, :hw] = h2e
        o_ref[:, hw:] = h2o

    out2d = pl.pallas_call(
        kernel,
        out_shape=jax.ShapeDtypeStruct((NH, 2 * hw), jnp.float32),
        compiler_params=pltpu.CompilerParams(vmem_limit_bytes=64 * 1024 * 1024),
    )(x2d, ops["w1_cat"], ops["bias1_cat"], ops["m2_stack"], ops["gs1"],
      ops["gs2"], ops["g1_row"], ops["b1_row"], ops["g2_row"], ops["b2_row"])

    # lanes = [parity][w][c]; rows = [n][h]  ->  NCHW with row index 2h + parity
    out = out2d.reshape(N, H, 2, W2, Co)
    return jnp.transpose(out, (0, 4, 1, 2, 3)).reshape(N, Co, H2, W2)


# ---------------------------------------------------------------------------
# Pure-JAX reference (correctness guard)
# ---------------------------------------------------------------------------
def _reference_forward(x_nchw, params, eps=1e-5):
    N, Cin, H, W = x_nchw.shape
    x = jnp.transpose(x_nchw, (0, 2, 3, 1))
    wt = params["wt"]
    y = jnp.einsum("nhwi,iokl->nhkwlo", x, wt).reshape(N, 2 * H, 2 * W, wt.shape[1])
    y = y + params["bt"]

    def conv3x3_reflect(a, w):
        Hc, Wc = a.shape[1], a.shape[2]
        ap = jnp.pad(a, ((0, 0), (1, 1), (1, 1), (0, 0)), mode="reflect")
        out = 0.0
        for dh in range(3):
            for dw in range(3):
                out = out + jnp.einsum("nhwi,oi->nhwo",
                                       ap[:, dh:dh + Hc, dw:dw + Wc, :],
                                       w[:, :, dh, dw])
        return out

    def bn_relu(a, g, b):
        m = jnp.mean(a, axis=(0, 1, 2))
        v = jnp.mean((a - m) ** 2, axis=(0, 1, 2))
        return jnp.maximum((a - m) * lax.rsqrt(v + eps) * g + b, 0.0)

    h = bn_relu(conv3x3_reflect(y, params["w1"]), params["g1"], params["b1"])
    h = bn_relu(conv3x3_reflect(h, params["w2"]), params["g2"], params["b2"])
    return jnp.transpose(h, (0, 3, 1, 2))


# ---------------------------------------------------------------------------
if __name__ == "__main__":
    in_channels, out_channels = 4, 4
    N, H, W = 2, 16, 16
    c_half = in_channels // 2

    key = jax.random.PRNGKey(0)
    k1, k2, k3, k4, kx = jax.random.split(key, 5)

    params = {
        # ConvTranspose2d weight: (in_channels, out_channels, kH, kW), with bias
        "wt": 0.1 * jax.random.normal(k1, (in_channels, c_half, 2, 2), jnp.float32),
        "bt": 0.1 * jax.random.normal(k2, (c_half,), jnp.float32),
        # DoubleConv conv weights: (out, in, 3, 3), no bias
        "w1": 0.1 * jax.random.normal(k3, (out_channels, c_half, 3, 3), jnp.float32),
        "w2": 0.1 * jax.random.normal(k4, (out_channels, out_channels, 3, 3), jnp.float32),
        # BatchNorm2d affine params (PyTorch default init: weight=1, bias=0)
        "g1": jnp.ones((out_channels,), jnp.float32),
        "b1": jnp.zeros((out_channels,), jnp.float32),
        "g2": jnp.ones((out_channels,), jnp.float32),
        "b2": jnp.zeros((out_channels,), jnp.float32),
    }

    x = jax.random.normal(kx, (N, in_channels, H, W), jnp.float32)

    # Weight-derived matmul operands: computed once per weight set (hoisted).
    ops = prepare_upsample_operands(params, H, W)

    out = jax.block_until_ready(jax.jit(upsample_forward)(x, ops))
    assert out.shape == (N, out_channels, 2 * H, 2 * W), out.shape

    ref = jax.block_until_ready(_reference_forward(x, params))
    max_err = float(jnp.max(jnp.abs(out - ref)))
    assert jnp.allclose(out, ref, rtol=5e-2, atol=5e-2), max_err

    print("KERNEL_OK")
</pallas_src>

<mosaic_0001>
module attributes {stable_mosaic.version = 11 : i64} {
  func.func @kernel(%arg0: memref<32x64xf32, #tpu.memory_space<vmem>>, %arg1: memref<192x256xbf16, #tpu.memory_space<vmem>>, %arg2: memref<1x256xf32, #tpu.memory_space<vmem>>, %arg3: memref<384x128xbf16, #tpu.memory_space<vmem>>, %arg4: memref<256x256xf32, #tpu.memory_space<vmem>>, %arg5: memref<128x128xf32, #tpu.memory_space<vmem>>, %arg6: memref<1x256xf32, #tpu.memory_space<vmem>>, %arg7: memref<1x256xf32, #tpu.memory_space<vmem>>, %arg8: memref<1x128xf32, #tpu.memory_space<vmem>>, %arg9: memref<1x128xf32, #tpu.memory_space<vmem>>, %arg10: memref<32x256xf32, #tpu.memory_space<vmem>>) attributes {dimension_semantics = [], scalar_prefetch = 0 : i64, scratch_operands = 0 : i64, tpu.core_type = #tpu.core_type<tc>} {
    %0 = tpu.iota {dimensions = array<i32: 0>} : vector<32x1xi32>
    %c16_i32 = arith.constant 16 : i32
    %c0_i32 = arith.constant 0 : i32
    %1 = arith.cmpi eq, %c16_i32, %c0_i32 : i32
    %c1_i32 = arith.constant 1 : i32
    %2 = arith.select %1, %c1_i32, %c16_i32 : i32
    %3 = vector.broadcast %2 : i32 to vector<32x1xi32>
    %4 = arith.remsi %0, %3 : vector<32x1xi32>
    %c0_i32_0 = arith.constant 0 : i32
    %5 = vector.broadcast %c0_i32_0 : i32 to vector<32x1xi32>
    %6 = arith.cmpi ne, %4, %5 : vector<32x1xi32>
    %c0_i32_1 = arith.constant 0 : i32
    %7 = vector.broadcast %c0_i32_1 : i32 to vector<32x1xi32>
    %8 = arith.cmpi slt, %4, %7 : vector<32x1xi32>
    %c0_i32_2 = arith.constant 0 : i32
    %9 = arith.cmpi slt, %2, %c0_i32_2 : i32
    %10 = vector.broadcast %9 : i1 to vector<32x1xi1>
    %11 = vector.broadcast %10 : vector<32x1xi1> to vector<32x1xi1>
    %12 = arith.xori %8, %11 : vector<32x1xi1>
    %13 = arith.andi %12, %6 : vector<32x1xi1>
    %14 = vector.broadcast %2 : i32 to vector<32x1xi32>
    %15 = arith.addi %4, %14 : vector<32x1xi32>
    %16 = arith.select %13, %15, %4 : vector<32x1xi1>, vector<32x1xi32>
    %c0_i32_3 = arith.constant 0 : i32
    %17 = vector.broadcast %c0_i32_3 : i32 to vector<32x1xi32>
    %18 = arith.cmpi eq, %16, %17 : vector<32x1xi32>
    %c15_i32 = arith.constant 15 : i32
    %19 = vector.broadcast %c15_i32 : i32 to vector<32x1xi32>
    %20 = arith.cmpi eq, %16, %19 : vector<32x1xi32>
    %c0 = arith.constant 0 : index
    %c0_4 = arith.constant 0 : index
    %21 = vector.load %arg0[%c0, %c0_4] : memref<32x64xf32, #tpu.memory_space<vmem>>, vector<32x64xf32>
    %c1_i32_5 = arith.constant 1 : i32
    %22 = tpu.dynamic_rotate %21 by %c1_i32_5 dim 0 : vector<32x64xf32>, i32 -> vector<32x64xf32>
    %23 = vector.shape_cast %18 : vector<32x1xi1> to vector<32x1xi1>
    %24 = vector.broadcast %23 : vector<32x1xi1> to vector<32x64xi1>
    %25 = arith.select %24, %21, %22 : vector<32x64xi1>, vector<32x64xf32>
    %c31_i32 = arith.constant 31 : i32
    %26 = tpu.dynamic_rotate %21 by %c31_i32 dim 0 : vector<32x64xf32>, i32 -> vector<32x64xf32>
    %27 = vector.shape_cast %20 : vector<32x1xi1> to vector<32x1xi1>
    %28 = vector.broadcast %27 : vector<32x1xi1> to vector<32x64xi1>
    %29 = arith.select %28, %21, %26 : vector<32x64xi1>, vector<32x64xf32>
    %30 = tpu.concatenate %25, %21, %29 in 1 : vector<32x64xf32>, vector<32x64xf32>, vector<32x64xf32> -> vector<32x192xf32>
    %31 = arith.truncf %30 : vector<32x192xf32> to vector<32x192xbf16>
    %c0_6 = arith.constant 0 : index
    %c0_7 = arith.constant 0 : index
    %32 = vector.load %arg1[%c0_6, %c0_7] : memref<192x256xbf16, #tpu.memory_space<vmem>>, vector<192x256xbf16>
    %cst = arith.constant dense<0.000000e+00> : vector<32x256xf32>
    %33 = tpu.matmul %31, %32, %cst {dimension_numbers = #tpu.dot_dimension_numbers<[1], [0], [0], [1], [0, 0, 1, 1], [], []>} : vector<32x192xbf16>, vector<192x256xbf16>, vector<32x256xf32> -> vector<32x256xf32>
    %c0_8 = arith.constant 0 : index
    %c0_9 = arith.constant 0 : index
    %34 = vector.load %arg2[%c0_8, %c0_9] : memref<1x256xf32, #tpu.memory_space<vmem>>, vector<1x256xf32>
    %35 = vector.broadcast %34 : vector<1x256xf32> to vector<32x256xf32>
    %36 = arith.addf %33, %35 : vector<32x256xf32>
    %c0_10 = arith.constant 0 : index
    %c0_11 = arith.constant 0 : index
    %37 = vector.load %arg4[%c0_10, %c0_11] : memref<256x256xf32, #tpu.memory_space<vmem>>, vector<256x256xf32>
    %c0_12 = arith.constant 0 : index
    %c0_13 = arith.constant 0 : index
    %38 = vector.load %arg6[%c0_12, %c0_13] : memref<1x256xf32, #tpu.memory_space<vmem>>, vector<1x256xf32>
    %c0_14 = arith.constant 0 : index
    %c0_15 = arith.constant 0 : index
    %39 = vector.load %arg7[%c0_14, %c0_15] : memref<1x256xf32, #tpu.memory_space<vmem>>, vector<1x256xf32>
    %cst_16 = arith.constant 0.000000e+00 : f32
    %40 = vector.broadcast %cst_16 : f32 to vector<1x256xf32>
    %cst_17 = arith.constant 0.000000e+00 : f32
    %41 = vector.broadcast %cst_17 : f32 to vector<1x256xf32>
    %cst_18 = arith.constant dense<0.000000e+00> : vector<256xf32>
    %42 = vector.multi_reduction <add>, %36, %cst_18 [0] : vector<32x256xf32> to vector<256xf32>
    %43 = vector.shape_cast %42 : vector<256xf32> to vector<1x256xf32>
    %44 = arith.addf %40, %43 : vector<1x256xf32>
    %45 = arith.mulf %36, %36 : vector<32x256xf32>
    %cst_19 = arith.constant dense<0.000000e+00> : vector<256xf32>
    %46 = vector.multi_reduction <add>, %45, %cst_19 [0] : vector<32x256xf32> to vector<256xf32>
    %47 = vector.shape_cast %46 : vector<256xf32> to vector<1x256xf32>
    %48 = arith.addf %41, %47 : vector<1x256xf32>
    %cst_20 = arith.constant dense<0.000000e+00> : vector<1x256xf32>
    %49 = tpu.matmul %44, %37, %cst_20 {dimension_numbers = #tpu.dot_dimension_numbers<[1], [0], [0], [1], [0, 0, 1, 1], [], []>} : vector<1x256xf32>, vector<256x256xf32>, vector<1x256xf32> -> vector<1x256xf32>
    %cst_21 = arith.constant 4.8828125E-4 : f32
    %50 = vector.broadcast %cst_21 : f32 to vector<1x256xf32>
    %51 = arith.mulf %49, %50 : vector<1x256xf32>
    %cst_22 = arith.constant dense<0.000000e+00> : vector<1x256xf32>
    %52 = tpu.matmul %48, %37, %cst_22 {dimension_numbers = #tpu.dot_dimension_numbers<[1], [0], [0], [1], [0, 0, 1, 1], [], []>} : vector<1x256xf32>, vector<256x256xf32>, vector<1x256xf32> -> vector<1x256xf32>
    %cst_23 = arith.constant 4.8828125E-4 : f32
    %53 = vector.broadcast %cst_23 : f32 to vector<1x256xf32>
    %54 = arith.mulf %52, %53 : vector<1x256xf32>
    %55 = arith.mulf %51, %51 : vector<1x256xf32>
    %56 = arith.subf %54, %55 : vector<1x256xf32>
    %cst_24 = arith.constant 9.99999974E-6 : f32
    %57 = vector.broadcast %cst_24 : f32 to vector<1x256xf32>
    %58 = arith.addf %56, %57 : vector<1x256xf32>
    %59 = math.rsqrt %58 : vector<1x256xf32>
    %60 = arith.mulf %38, %59 : vector<1x256xf32>
    %61 = arith.mulf %51, %60 : vector<1x256xf32>
    %62 = arith.subf %39, %61 : vector<1x256xf32>
    %63 = vector.broadcast %60 : vector<1x256xf32> to vector<32x256xf32>
    %64 = arith.mulf %36, %63 : vector<32x256xf32>
    %65 = vector.broadcast %62 : vector<1x256xf32> to vector<32x256xf32>
    %66 = arith.addf %64, %65 : vector<32x256xf32>
    %cst_25 = arith.constant 0.000000e+00 : f32
    %67 = vector.broadcast %cst_25 : f32 to vector<32x256xf32>
    %68 = arith.maximumf %66, %67 : vector<32x256xf32>
    %69 = vector.extract_strided_slice %68 {offsets = [0, 0], sizes = [32, 128], strides = [1, 1]} : vector<32x256xf32> to vector<32x128xf32>
    %70 = vector.extract_strided_slice %68 {offsets = [0, 128], sizes = [32, 128], strides = [1, 1]} : vector<32x256xf32> to vector<32x128xf32>
    %c1_i32_26 = arith.constant 1 : i32
    %71 = tpu.dynamic_rotate %70 by %c1_i32_26 dim 0 : vector<32x128xf32>, i32 -> vector<32x128xf32>
    %72 = vector.shape_cast %18 : vector<32x1xi1> to vector<32x1xi1>
    %73 = vector.broadcast %72 : vector<32x1xi1> to vector<32x128xi1>
    %74 = arith.select %73, %70, %71 : vector<32x128xi1>, vector<32x128xf32>
    %75 = tpu.concatenate %74, %69, %70 in 1 : vector<32x128xf32>, vector<32x128xf32>, vector<32x128xf32> -> vector<32x384xf32>
    %76 = arith.truncf %75 : vector<32x384xf32> to vector<32x384xbf16>
    %c31_i32_27 = arith.constant 31 : i32
    %77 = tpu.dynamic_rotate %69 by %c31_i32_27 dim 0 : vector<32x128xf32>, i32 -> vector<32x128xf32>
    %78 = vector.shape_cast %20 : vector<32x1xi1> to vector<32x1xi1>
    %79 = vector.broadcast %78 : vector<32x1xi1> to vector<32x128xi1>
    %80 = arith.select %79, %69, %77 : vector<32x128xi1>, vector<32x128xf32>
    %81 = tpu.concatenate %69, %70, %80 in 1 : vector<32x128xf32>, vector<32x128xf32>, vector<32x128xf32> -> vector<32x384xf32>
    %82 = arith.truncf %81 : vector<32x384xf32> to vector<32x384xbf16>
    %c0_28 = arith.constant 0 : index
    %c0_29 = arith.constant 0 : index
    %83 = vector.load %arg3[%c0_28, %c0_29] : memref<384x128xbf16, #tpu.memory_space<vmem>>, vector<384x128xbf16>
    %cst_30 = arith.constant dense<0.000000e+00> : vector<32x128xf32>
    %84 = tpu.matmul %76, %83, %cst_30 {dimension_numbers = #tpu.dot_dimension_numbers<[1], [0], [0], [1], [0, 0, 1, 1], [], []>} : vector<32x384xbf16>, vector<384x128xbf16>, vector<32x128xf32> -> vector<32x128xf32>
    %c0_31 = arith.constant 0 : index
    %c0_32 = arith.constant 0 : index
    %85 = vector.load %arg3[%c0_31, %c0_32] : memref<384x128xbf16, #tpu.memory_space<vmem>>, vector<384x128xbf16>
    %cst_33 = arith.constant dense<0.000000e+00> : vector<32x128xf32>
    %86 = tpu.matmul %82, %85, %cst_33 {dimension_numbers = #tpu.dot_dimension_numbers<[1], [0], [0], [1], [0, 0, 1, 1], [], []>} : vector<32x384xbf16>, vector<384x128xbf16>, vector<32x128xf32> -> vector<32x128xf32>
    %c0_34 = arith.constant 0 : index
    %c0_35 = arith.constant 0 : index
    %87 = vector.load %arg5[%c0_34, %c0_35] : memref<128x128xf32, #tpu.memory_space<vmem>>, vector<128x128xf32>
    %c0_36 = arith.constant 0 : index
    %c0_37 = arith.constant 0 : index
    %88 = vector.load %arg8[%c0_36, %c0_37] : memref<1x128xf32, #tpu.memory_space<vmem>>, vector<1x128xf32>
    %c0_38 = arith.constant 0 : index
    %c0_39 = arith.constant 0 : index
    %89 = vector.load %arg9[%c0_38, %c0_39] : memref<1x128xf32, #tpu.memory_space<vmem>>, vector<1x128xf32>
    %cst_40 = arith.constant 0.000000e+00 : f32
    %90 = vector.broadcast %cst_40 : f32 to vector<1x128xf32>
    %cst_41 = arith.constant 0.000000e+00 : f32
    %91 = vector.broadcast %cst_41 : f32 to vector<1x128xf32>
    %cst_42 = arith.constant dense<0.000000e+00> : vector<128xf32>
    %92 = vector.multi_reduction <add>, %84, %cst_42 [0] : vector<32x128xf32> to vector<128xf32>
    %93 = vector.shape_cast %92 : vector<128xf32> to vector<1x128xf32>
    %94 = arith.addf %90, %93 : vector<1x128xf32>
    %95 = arith.mulf %84, %84 : vector<32x128xf32>
    %cst_43 = arith.constant dense<0.000000e+00> : vector<128xf32>
    %96 = vector.multi_reduction <add>, %95, %cst_43 [0] : vector<32x128xf32> to vector<128xf32>
    %97 = vector.shape_cast %96 : vector<128xf32> to vector<1x128xf32>
    %98 = arith.addf %91, %97 : vector<1x128xf32>
    %cst_44 = arith.constant dense<0.000000e+00> : vector<128xf32>
    %99 = vector.multi_reduction <add>, %86, %cst_44 [0] : vector<32x128xf32> to vector<128xf32>
    %100 = vector.shape_cast %99 : vector<128xf32> to vector<1x128xf32>
    %101 = arith.addf %94, %100 : vector<1x128xf32>
    %102 = arith.mulf %86, %86 : vector<32x128xf32>
    %cst_45 = arith.constant dense<0.000000e+00> : vector<128xf32>
    %103 = vector.multi_reduction <add>, %102, %cst_45 [0] : vector<32x128xf32> to vector<128xf32>
    %104 = vector.shape_cast %103 : vector<128xf32> to vector<1x128xf32>
    %105 = arith.addf %98, %104 : vector<1x128xf32>
    %cst_46 = arith.constant dense<0.000000e+00> : vector<1x128xf32>
    %106 = tpu.matmul %101, %87, %cst_46 {dimension_numbers = #tpu.dot_dimension_numbers<[1], [0], [0], [1], [0, 0, 1, 1], [], []>} : vector<1x128xf32>, vector<128x128xf32>, vector<1x128xf32> -> vector<1x128xf32>
    %cst_47 = arith.constant 4.8828125E-4 : f32
    %107 = vector.broadcast %cst_47 : f32 to vector<1x128xf32>
    %108 = arith.mulf %106, %107 : vector<1x128xf32>
    %cst_48 = arith.constant dense<0.000000e+00> : vector<1x128xf32>
    %109 = tpu.matmul %105, %87, %cst_48 {dimension_numbers = #tpu.dot_dimension_numbers<[1], [0], [0], [1], [0, 0, 1, 1], [], []>} : vector<1x128xf32>, vector<128x128xf32>, vector<1x128xf32> -> vector<1x128xf32>
    %cst_49 = arith.constant 4.8828125E-4 : f32
    %110 = vector.broadcast %cst_49 : f32 to vector<1x128xf32>
    %111 = arith.mulf %109, %110 : vector<1x128xf32>
    %112 = arith.mulf %108, %108 : vector<1x128xf32>
    %113 = arith.subf %111, %112 : vector<1x128xf32>
    %cst_50 = arith.constant 9.99999974E-6 : f32
    %114 = vector.broadcast %cst_50 : f32 to vector<1x128xf32>
    %115 = arith.addf %113, %114 : vector<1x128xf32>
    %116 = math.rsqrt %115 : vector<1x128xf32>
    %117 = arith.mulf %88, %116 : vector<1x128xf32>
    %118 = arith.mulf %108, %117 : vector<1x128xf32>
    %119 = arith.subf %89, %118 : vector<1x128xf32>
    %120 = vector.broadcast %117 : vector<1x128xf32> to vector<32x128xf32>
    %121 = arith.mulf %84, %120 : vector<32x128xf32>
    %122 = vector.broadcast %119 : vector<1x128xf32> to vector<32x128xf32>
    %123 = arith.addf %121, %122 : vector<32x128xf32>
    %cst_51 = arith.constant 0.000000e+00 : f32
    %124 = vector.broadcast %cst_51 : f32 to vector<32x128xf32>
    %125 = arith.maximumf %123, %124 : vector<32x128xf32>
    %126 = vector.broadcast %117 : vector<1x128xf32> to vector<32x128xf32>
    %127 = arith.mulf %86, %126 : vector<32x128xf32>
    %128 = vector.broadcast %119 : vector<1x128xf32> to vector<32x128xf32>
    %129 = arith.addf %127, %128 : vector<32x128xf32>
    %cst_52 = arith.constant 0.000000e+00 : f32
    %130 = vector.broadcast %cst_52 : f32 to vector<32x128xf32>
    %131 = arith.maximumf %129, %130 : vector<32x128xf32>
    %c0_53 = arith.constant 0 : index
    %c0_54 = arith.constant 0 : index
    %132 = vector.load %arg10[%c0_53, %c0_54] : memref<32x256xf32, #tpu.memory_space<vmem>>, vector<32x128xf32>
    tpu.vector_store %arg10[%c0_53, %c0_54], %125 {strides = array<i32>} : memref<32x256xf32, #tpu.memory_space<vmem>>, vector<32x128xf32>,
    %c0_55 = arith.constant 0 : index
    %c128 = arith.constant 128 : index
    %133 = vector.load %arg10[%c0_55, %c128] : memref<32x256xf32, #tpu.memory_space<vmem>>, vector<32x128xf32>
    tpu.vector_store %arg10[%c0_55, %c128], %131 {strides = array<i32>} : memref<32x256xf32, #tpu.memory_space<vmem>>, vector<32x128xf32>,
    return
  }
}

</mosaic_0001>

<llo_original>
// kernel: upsample_forward.1
$region0: #{upsample_forward.1}
  #allocation0 [shape = 'u32[]', space=smem, size = 0x4, offset = 0x4, fixed_abs, tag = 'smem constant byte address 0x4 - core index']
  #allocation1 [shape = 'u32[72,128]{1,0:T(1,128)}', space=vmem, size = 0x9000, scoped, tag = 'internal scratch']
  %s0 = inlined_call_operand.vmem [shape: f32[32,64], index: 0, kind: input, shape index: {}]
  %s1 = inlined_call_operand.hbm [shape: bf16[192,256], index: 1, kind: input, shape index: {}]
  %s2 = inlined_call_operand.vmem [shape: f32[1,256], index: 2, kind: input, shape index: {}]
  %s3 = inlined_call_operand.hbm [shape: bf16[384,128], index: 3, kind: input, shape index: {}]
  %s4 = inlined_call_operand.vmem [shape: f32[256,256], index: 4, kind: input, shape index: {}]
  %s5 = inlined_call_operand.hbm [shape: f32[128,128], index: 5, kind: input, shape index: {}]
  %s6 = inlined_call_operand.vmem [shape: f32[1,256], index: 6, kind: input, shape index: {}]
  %s7 = inlined_call_operand.vmem [shape: f32[1,256], index: 7, kind: input, shape index: {}]
  %s8 = inlined_call_operand.vmem [shape: f32[1,128], index: 8, kind: input, shape index: {}]
  %s9 = inlined_call_operand.vmem [shape: f32[1,128], index: 9, kind: input, shape index: {}]
  %s10 = inlined_call_operand.vmem [shape: f32[32,256], index: 10, kind: output, shape index: {}]
  %s11 = sld [smem:[#allocation0]]
  $region62: #{upsample_forward.1} parent=0
    _
  %s13 = ssub.s32 1, %s11
  %s14 = scalar_select 0, %s13, %s11
  $region1: #{upsample_forward.1} parent=0
    #allocation2 [shape = 'u8[98304]{0}', space=vmem, size = 0x18000, scoped, tag = 'input window, operand 1, single buffered']
    #allocation3 [shape = 's32[1]{0}', space=sflag, size = 0x4, scoped, tag = 'scoped memory for upsample_forward.1']
    #allocation4 [shape = 'u8[98304]{0}', space=vmem, size = 0x18000, scoped, tag = 'input window, operand 3, single buffered']
    #allocation5 [shape = 's32[1]{0}', space=sflag, size = 0x4, scoped, tag = 'scoped memory for upsample_forward.1']
    #allocation6 [shape = 'u8[65536]{0}', space=vmem, size = 0x10000, scoped, tag = 'input window, operand 5, single buffered']
    %15 = vsyncpa [#allocation3], 0
    %16 = vsyncpa [#allocation5], 0
    // Predicated region
    $region2: #{upsample_forward.1} parent=1 // pred_check
      _
    $region3: #{upsample_forward.1} parent=1 // pred_check_branch
      %18 = sbr.rel (0) target = $region5
    $region4: #{upsample_forward.1} parent=1 // pred_region
      _
    $region5: #{upsample_forward.1} parent=1 // pred_fallthru
      _
    // Predicated region
    $region6: #{upsample_forward.1} parent=1 // pred_check
      _
    $region7: #{upsample_forward.1} parent=1 // pred_check_branch
      %20 = sbr.rel (0) target = $region9
    $region8: #{upsample_forward.1} parent=1 // pred_region
      %22 = vsyncadd [#allocation3], 0
      %s23 = sshll.u32 %s1, 4
      %s24 = int_to_ptr.hbm [resolvable:$true] %s23
      %s25 = sshll.u32 [#allocation2], 4
      %s26 = int_to_ptr.vmem [resolvable:$true] %s25
      %31 = dma.hbm_to_vmem [thread:$0]  %s24, 3072, %s26, [#allocation3], 128, 128, 8
    $region9: #{upsample_forward.1} parent=1 // pred_fallthru
      _
    // Predicated region
    $region10: #{upsample_forward.1} parent=1 // pred_check
      _
    $region11: #{upsample_forward.1} parent=1 // pred_check_branch
      %33 = sbr.rel (0) target = $region13
    $region12: #{upsample_forward.1} parent=1 // pred_region
      _
    $region13: #{upsample_forward.1} parent=1 // pred_fallthru
      _
    // Predicated region
    $region14: #{upsample_forward.1} parent=1 // pred_check
      _
    $region15: #{upsample_forward.1} parent=1 // pred_check_branch
      %35 = sbr.rel (0) target = $region17
    $region16: #{upsample_forward.1} parent=1 // pred_region
      %37 = vsyncadd [#allocation5], 0
      %s38 = sshll.u32 %s3, 4
      %s39 = int_to_ptr.hbm [resolvable:$true] %s38
      %s40 = sshll.u32 [#allocation4], 4
      %s41 = int_to_ptr.vmem [resolvable:$true] %s40
      %46 = dma.hbm_to_vmem [thread:$0]  %s39, 3072, %s41, [#allocation5], 64, 64, 4
    $region17: #{upsample_forward.1} parent=1 // pred_fallthru
      _
    // Predicated region
    $region18: #{upsample_forward.1} parent=1 // pred_check
      _
    $region19: #{upsample_forward.1} parent=1 // pred_check_branch
      %48 = sbr.rel (0) target = $region21
    $region20: #{upsample_forward.1} parent=1 // pred_region
      _
    $region21: #{upsample_forward.1} parent=1 // pred_fallthru
      _
    // Predicated region
    $region22: #{upsample_forward.1} parent=1 // pred_check
      _
    $region23: #{upsample_forward.1} parent=1 // pred_check_branch
      %50 = sbr.rel (0) target = $region25
    $region24: #{upsample_forward.1} parent=1 // pred_region
      %52 = vsyncadd [#allocation5], 0
      %s53 = sshll.u32 %s5, 4
      %s54 = int_to_ptr.hbm [resolvable:$true] %s53
      %s55 = sshll.u32 [#allocation6], 4
      %s56 = int_to_ptr.vmem [resolvable:$true] %s55
      %61 = dma.hbm_to_vmem [thread:$0]  %s54, 2048, %s56, [#allocation5], 128, 128, 8
    $region25: #{upsample_forward.1} parent=1 // pred_fallthru
      _
    // Predicated region
    $region26: #{upsample_forward.1} parent=1 // pred_check
      _
    $region27: #{upsample_forward.1} parent=1 // pred_check_branch
      %63 = sbr.rel (0) target = $region29
    $region28: #{upsample_forward.1} parent=1 // pred_region
      _
    $region29: #{upsample_forward.1} parent=1 // pred_fallthru
      _
    // Predicated region
    $region30: #{upsample_forward.1} parent=1 // pred_check
      _
    $region31: #{upsample_forward.1} parent=1 // pred_check_branch
      %65 = sbr.rel (0) target = $region33
    $region32: #{upsample_forward.1} parent=1 // pred_region
      _
    $region33: #{upsample_forward.1} parent=1 // pred_fallthru
      _
    // Predicated region
    $region34: #{upsample_forward.1} parent=1 // pred_check
      _
    $region35: #{upsample_forward.1} parent=1 // pred_check_branch
      %67 = sbr.rel (0) target = $region37
    $region36: #{upsample_forward.1} parent=1 // pred_region
      _
    $region37: #{upsample_forward.1} parent=1 // pred_fallthru
      _
    // Predicated region
    $region38: #{upsample_forward.1} parent=1 // pred_check
      _
    $region39: #{upsample_forward.1} parent=1 // pred_check_branch
      %69 = sbr.rel (0) target = $region41
    $region40: #{upsample_forward.1} parent=1 // pred_region
      _
    $region41: #{upsample_forward.1} parent=1 // pred_fallthru
      _
    // Predicated region
    $region42: #{upsample_forward.1} parent=1 // pred_check
      _
    $region43: #{upsample_forward.1} parent=1 // pred_check_branch
      %71 = sbr.rel (0) target = $region45
    $region44: #{upsample_forward.1} parent=1 // pred_region
      %73 = dma.done [#allocation3], 3072
    $region45: #{upsample_forward.1} parent=1 // pred_fallthru
      _
    // Predicated region
    $region46: #{upsample_forward.1} parent=1 // pred_check
      _
    $region47: #{upsample_forward.1} parent=1 // pred_check_branch
      %75 = sbr.rel (0) target = $region49
    $region48: #{upsample_forward.1} parent=1 // pred_region
      %77 = dma.done [#allocation5], 3072
    $region49: #{upsample_forward.1} parent=1 // pred_fallthru
      _
    // Predicated region
    $region50: #{upsample_forward.1} parent=1 // pred_check
      _
    $region51: #{upsample_forward.1} parent=1 // pred_check_branch
      %79 = sbr.rel (0) target = $region53
    $region52: #{upsample_forward.1} parent=1 // pred_region
      %81 = dma.done [#allocation5], 2048
    $region53: #{upsample_forward.1} parent=1 // pred_fallthru
      _
    %v83 = vlaneseq
    %v84 = vshrl.u32 %v83, 7
    %v85 = vadd.s32 %v84, 8
    %v86 = vadd.s32 %v84, 16
    %v87 = vadd.s32 %v84, 24
    %vm88 = vcmp.lt.s32.totalorder %v84, 0
    %v89 = vsub.s32 0, %v84
    %v90 = vsel %vm88, %v89, %v84
    %v91 = vshrl.u32 %v90, 4
    %v92 = vand.u32 %v90, 15
    %v93 = vsub.s32 0, %v92
    %v94 = vsel %vm88, %v93, %v92
    %vm95 = vcmp.lt.s32.totalorder %v85, 0
    %v96 = vsub.s32 0, %v85
    %v97 = vsel %vm95, %v96, %v85
    %v98 = vshrl.u32 %v97, 4
    %v99 = vand.u32 %v97, 15
    %v100 = vsub.s32 0, %v99
    %v101 = vsel %vm95, %v100, %v99
    %vm102 = vcmp.lt.s32.totalorder %v86, 0
    %v103 = vsub.s32 0, %v86
    %v104 = vsel %vm102, %v103, %v86
    %v105 = vshrl.u32 %v104, 4
    %v106 = vand.u32 %v104, 15
    %v107 = vsub.s32 0, %v106
    %v108 = vsel %vm102, %v107, %v106
    %vm109 = vcmp.lt.s32.totalorder %v87, 0
    %v110 = vsub.s32 0, %v87
    %v111 = vsel %vm109, %v110, %v87
    %v112 = vshrl.u32 %v111, 4
    %v113 = vand.u32 %v111, 15
    %v114 = vsub.s32 0, %v113
    %v115 = vsel %vm109, %v114, %v113
    %vm116 = vcmp.ne.s32.totalorder %v94, 0
    %vm117 = vcmp.ne.s32.totalorder %v101, 0
    %vm118 = vcmp.ne.s32.totalorder %v108, 0
    %vm119 = vcmp.ne.s32.totalorder %v115, 0
    %vm120 = vcmp.lt.s32.totalorder %v94, 0
    %vm121 = vcmp.lt.s32.totalorder %v101, 0
    %vm122 = vcmp.lt.s32.totalorder %v108, 0
    %vm123 = vcmp.lt.s32.totalorder %v115, 0
    %vm124 = vmand %vm120, %vm116
    %vm125 = vmand %vm121, %vm117
    %vm126 = vmand %vm122, %vm118
    %vm127 = vmand %vm123, %vm119
    %v128 = vadd.s32 %v94, 16
    %v129 = vadd.s32 %v101, 16
    %v130 = vadd.s32 %v108, 16
    %v131 = vadd.s32 %v115, 16
    %v132 = vsel %vm124, %v128, %v94
    %v133 = vsel %vm125, %v129, %v101
    %v134 = vsel %vm126, %v130, %v108
    %v135 = vsel %vm127, %v131, %v115
    %vm136 = vcmp.eq.s32.totalorder %v132, 0
    %vm137 = vcmp.eq.s32.totalorder %v133, 0
    %vm138 = vcmp.eq.s32.totalorder %v134, 0
    %vm139 = vcmp.eq.s32.totalorder %v135, 0
    %vm140 = vcmp.eq.s32.totalorder %v132, 15
    %vm141 = vcmp.eq.s32.totalorder %v133, 15
    %vm142 = vcmp.eq.s32.totalorder %v134, 15
    %vm143 = vcmp.eq.s32.totalorder %v135, 15
    %v144 = vld [vmem:[%s0] sm:$0xff]
    %v145 = vld [vmem:[%s0 + $0x8] sm:$0xff]
    %v146 = vld [vmem:[%s0 + $0x10] sm:$0xff]
    %v147 = vld [vmem:[%s0 + $0x18] sm:$0xff]
    %v148 = vrot.slane %v144, 7
    %v149 = vrot.slane %v145, 7
    %v150 = vrot.slane %v146, 7
    %v151 = vrot.slane %v147, 7
    %vm152 = vcmp.lt.s32.totalorder %v84, 1
    %v153 = vsel %vm152, %v150, %v151
    %v154 = vsel %vm152, %v149, %v150
    %v155 = vsel %vm152, %v148, %v149
    %v156 = vsel %vm152, %v151, %v148
    %v157 = vsel %vm136, 1, 0
    %v158 = vsel %vm137, 1, 0
    %v159 = vsel %vm138, 1, 0
    %v160 = vsel %vm139, 1, 0
    %vm161 = vcmp.eq.s32.totalorder %v157, 1
    %vm162 = vcmp.eq.s32.totalorder %v158, 1
    %vm163 = vcmp.eq.s32.totalorder %v159, 1
    %vm164 = vcmp.eq.s32.totalorder %v160, 1
    %v165 = vsel %vm161, %v144, %v156
    %v166 = vsel %vm162, %v145, %v155
    %v167 = vsel %vm163, %v146, %v154
    %v168 = vsel %vm164, %v147, %v153
    %v169 = vrot.slane %v144, 1
    %v170 = vrot.slane %v145, 1
    %v171 = vrot.slane %v146, 1
    %v172 = vrot.slane %v147, 1
    %vm173 = vcmp.lt.s32.totalorder %v84, 7
    %v174 = vsel %vm173, %v171, %v172
    %v175 = vsel %vm173, %v170, %v171
    %v176 = vsel %vm173, %v169, %v170
    %v177 = vsel %vm173, %v172, %v169
    %v178 = vsel %vm140, 1, 0
    %v179 = vsel %vm141, 1, 0
    %v180 = vsel %vm142, 1, 0
    %v181 = vsel %vm143, 1, 0
    %vm182 = vcmp.eq.s32.totalorder %v178, 1
    %vm183 = vcmp.eq.s32.totalorder %v179, 1
    %vm184 = vcmp.eq.s32.totalorder %v180, 1
    %vm185 = vcmp.eq.s32.totalorder %v181, 1
    %v186 = vsel %vm182, %v144, %v176
    %v187 = vsel %vm183, %v145, %v175
    %v188 = vsel %vm184, %v146, %v174
    %v189 = vsel %vm185, %v147, %v177
    %194 = vrot.lane.b32.xlu0 %v144, 64
    %v195 = vpop.permute.xlu0 %194
    %196 = vrot.lane.b32.xlu0 %v145, 64
    %v197 = vpop.permute.xlu0 %196
    %198 = vrot.lane.b32.xlu0 %v146, 64
    %v199 = vpop.permute.xlu0 %198
    %200 = vrot.lane.b32.xlu0 %v147, 64
    %v201 = vpop.permute.xlu0 %200
    %vm206 = vcmask 523264
    %v207 = vsel %vm206, %v165, %v195
    %v208 = vsel %vm206, %v166, %v197
    %v209 = vsel %vm206, %v167, %v199
    %v210 = vsel %vm206, %v168, %v201
    %v211 = vpack.c.bf16 %v208, %v207
    %v212 = vpack.c.bf16 %v187, %v186
    %v213 = vpack.c.bf16 %v210, %v209
    %v214 = vpack.c.bf16 %v189, %v188
    %v215 = vld [vmem:[#allocation2] sm:$0xff]
    %v216 = vld [vmem:[#allocation2 + $0x8] sm:$0xff]
    %v217 = vld [vmem:[#allocation2 + $0x10] sm:$0xff]
    %v218 = vld [vmem:[#allocation2 + $0x18] sm:$0xff]
    %v219 = vld [vmem:[#allocation2 + $0x20] sm:$0xff]
    %v220 = vld [vmem:[#allocation2 + $0x28] sm:$0xff]
    %v221 = vld [vmem:[#allocation2 + $0x30] sm:$0xff]
    %v222 = vld [vmem:[#allocation2 + $0x38] sm:$0xff]
    %v223 = vld [vmem:[#allocation2 + $0x40] sm:$0xff]
    %v224 = vld [vmem:[#allocation2 + $0x48] sm:$0xff]
    %v225 = vld [vmem:[#allocation2 + $0x50] sm:$0xff]
    %v226 = vld [vmem:[#allocation2 + $0x58] sm:$0xff]
    %v227 = vld [vmem:[#allocation2 + $0x60] sm:$0xff]
    %v228 = vld [vmem:[#allocation2 + $0x68] sm:$0xff]
    %v229 = vld [vmem:[#allocation2 + $0x70] sm:$0xff]
    %v230 = vld [vmem:[#allocation2 + $0x78] sm:$0xff]
    %v231 = vld [vmem:[#allocation2 + $0x80] sm:$0xff]
    %v232 = vld [vmem:[#allocation2 + $0x88] sm:$0xff]
    %v233 = vld [vmem:[#allocation2 + $0x90] sm:$0xff]
    %v234 = vld [vmem:[#allocation2 + $0x98] sm:$0xff]
    %v235 = vld [vmem:[#allocation2 + $0xa0] sm:$0xff]
    %v236 = vld [vmem:[#allocation2 + $0xa8] sm:$0xff]
    %v237 = vld [vmem:[#allocation2 + $0xb0] sm:$0xff]
    %v238 = vld [vmem:[#allocation2 + $0xb8] sm:$0xff]
    %v239 = vld [vmem:[%s2] sm:$0x3]
    %v241 = vperm.slane %v239, 0
    %v242 = vperm.slane %v239, 1
    %v269 = vunpack.c.l.b16 %v215
    %v270 = vunpack.c.h.b16 %v215
    %v271 = vunpack.c.l.b16 %v216
    %v272 = vunpack.c.h.b16 %v216
    %v273 = vunpack.c.l.b16 %v217
    %v274 = vunpack.c.h.b16 %v217
    %v275 = vunpack.c.l.b16 %v218
    %v276 = vunpack.c.h.b16 %v218
    %v277 = vunpack.c.l.b16 %v219
    %v278 = vunpack.c.h.b16 %v219
    %v279 = vunpack.c.l.b16 %v220
    %v280 = vunpack.c.h.b16 %v220
    %v281 = vunpack.c.l.b16 %v221
    %v282 = vunpack.c.h.b16 %v221
    %v283 = vunpack.c.l.b16 %v222
    %v284 = vunpack.c.h.b16 %v222
    %v285 = vunpack.c.l.b16 %v223
    %v286 = vunpack.c.h.b16 %v223
    %v287 = vunpack.c.l.b16 %v224
    %v288 = vunpack.c.h.b16 %v224
    %v289 = vunpack.c.l.b16 %v225
    %v290 = vunpack.c.h.b16 %v225
    %v291 = vunpack.c.l.b16 %v226
    %v292 = vunpack.c.h.b16 %v226
    %v293 = vunpack.c.l.b16 %v227
    %v294 = vunpack.c.h.b16 %v227
    %v295 = vunpack.c.l.b16 %v228
    %v296 = vunpack.c.h.b16 %v228
    %v297 = vunpack.c.l.b16 %v229
    %v298 = vunpack.c.h.b16 %v229
    %v299 = vunpack.c.l.b16 %v230
    %v300 = vunpack.c.h.b16 %v230
    %v301 = vunpack.c.l.b16 %v231
    %v302 = vunpack.c.h.b16 %v231
    %v303 = vunpack.c.l.b16 %v232
    %v304 = vunpack.c.h.b16 %v232
    %v305 = vunpack.c.l.b16 %v233
    %v306 = vunpack.c.h.b16 %v233
    %v307 = vunpack.c.l.b16 %v234
    %v308 = vunpack.c.h.b16 %v234
    %v309 = vunpack.c.l.b16 %v235
    %v310 = vunpack.c.h.b16 %v235
    %v311 = vunpack.c.l.b16 %v236
    %v312 = vunpack.c.h.b16 %v236
    %v313 = vunpack.c.l.b16 %v237
    %v314 = vunpack.c.h.b16 %v237
    %v315 = vunpack.c.l.b16 %v238
    %v316 = vunpack.c.h.b16 %v238
    %v317 = vpack.c.b16 %v271, %v269
    %v318 = vpack.c.b16 %v272, %v270
    %v319 = vpack.c.b16 %v275, %v273
    %v320 = vpack.c.b16 %v276, %v274
    %v321 = vpack.c.b16 %v279, %v277
    %v322 = vpack.c.b16 %v280, %v278
    %v323 = vpack.c.b16 %v283, %v281
    %v324 = vpack.c.b16 %v284, %v282
    %v325 = vpack.c.b16 %v287, %v285
    %v326 = vpack.c.b16 %v288, %v286
    %v327 = vpack.c.b16 %v291, %v289
    %v328 = vpack.c.b16 %v292, %v290
    %v329 = vpack.c.b16 %v295, %v293
    %v330 = vpack.c.b16 %v296, %v294
    %v331 = vpack.c.b16 %v299, %v297
    %v332 = vpack.c.b16 %v300, %v298
    %v333 = vpack.c.b16 %v303, %v301
    %v334 = vpack.c.b16 %v304, %v302
    %v335 = vpack.c.b16 %v307, %v305
    %v336 = vpack.c.b16 %v308, %v306
    %v337 = vpack.c.b16 %v311, %v309
    %v338 = vpack.c.b16 %v312, %v310
    %v339 = vpack.c.b16 %v315, %v313
    %v340 = vpack.c.b16 %v316, %v314
    %v366 = vsel %vm206, %v212, 0
    %v369 = vsel %vm206, %v214, 0
    %371 = vmatpush.bf16.msra.mxu0 %v331
    %372 = vmatpush.bf16.msra.mxu0 %v329
    %373 = vmatpush.bf16.msra.mxu0 %v327
    %374 = vmatpush.bf16.msra.mxu0 %v325
    %375 = vmatpush.bf16.msra.mxu0 %v323
    %376 = vmatpush.bf16.msra.mxu0 %v321
    %377 = vmatpush.bf16.msra.mxu0 %v319
    %378 = vmatpush.bf16.msra.mxu0 %v317
    %379 = vmatmul.bf16.gmra.mxu0 %v211
    %v380 = vpop.f32.mrf.mxu0
    %v381 = vadd.f32 %v241, %v380
    %v382 = vpop.f32.mrf.mxu0
    %v383 = vadd.f32 %v241, %v382
    %384 = vmatmul.bf16.gmra.mxu0 %v213
    %v385 = vpop.f32.mrf.mxu0
    %v386 = vadd.f32 %v241, %v385
    %v387 = vpop.f32.mrf.mxu0
    %v388 = vadd.f32 %v241, %v387
    %389 = vdwg.mxu0
    %390 = vmatpush.bf16.msra.mxu0 0
    %391 = vmatpush.bf16.msra.mxu0 0
    %392 = vmatpush.bf16.msra.mxu0 0
    %393 = vmatpush.bf16.msra.mxu0 0
    %394 = vmatpush.bf16.msra.mxu0 %v339
    %395 = vmatpush.bf16.msra.mxu0 %v337
    %396 = vmatpush.bf16.msra.mxu0 %v335
    %397 = vmatpush.bf16.msra.mxu0 %v333
    %398 = vmatmul.bf16.gmra.mxu0 %v366
    %v399 = vpop.f32.mrf.mxu0
    %v400 = vadd.f32 %v381, %v399
    %v401 = vpop.f32.mrf.mxu0
    %v402 = vadd.f32 %v383, %v401
    %403 = vmatmul.bf16.gmra.mxu0 %v369
    %v404 = vpop.f32.mrf.mxu0
    %v405 = vadd.f32 %v386, %v404
    %v406 = vpop.f32.mrf.mxu0
    %v407 = vadd.f32 %v388, %v406
    %408 = vdwg.mxu0
    %409 = vmatpush.bf16.msra.mxu0 %v332
    %410 = vmatpush.bf16.msra.mxu0 %v330
    %411 = vmatpush.bf16.msra.mxu0 %v328
    %412 = vmatpush.bf16.msra.mxu0 %v326
    %413 = vmatpush.bf16.msra.mxu0 %v324
    %414 = vmatpush.bf16.msra.mxu0 %v322
    %415 = vmatpush.bf16.msra.mxu0 %v320
    %416 = vmatpush.bf16.msra.mxu0 %v318
    %417 = vmatmul.bf16.gmra.mxu0 %v211
    %v418 = vpop.f32.mrf.mxu0
    %v419 = vadd.f32 %v242, %v418
    %v420 = vpop.f32.mrf.mxu0
    %v421 = vadd.f32 %v242, %v420
    %422 = vmatmul.bf16.gmra.mxu0 %v213
    %v423 = vpop.f32.mrf.mxu0
    %v424 = vadd.f32 %v242, %v423
    %v425 = vpop.f32.mrf.mxu0
    %v426 = vadd.f32 %v242, %v425
    %427 = vdwg.mxu0
    %428 = vmatpush.bf16.msra.mxu0 0
    %429 = vmatpush.bf16.msra.mxu0 0
    %430 = vmatpush.bf16.msra.mxu0 0
    %431 = vmatpush.bf16.msra.mxu0 0
    %432 = vmatpush.bf16.msra.mxu0 %v340
    %433 = vmatpush.bf16.msra.mxu0 %v338
    %434 = vmatpush.bf16.msra.mxu0 %v336
    %435 = vmatpush.bf16.msra.mxu0 %v334
    %436 = vmatmul.bf16.gmra.mxu0 %v366
    %v437 = vpop.f32.mrf.mxu0
    %v438 = vadd.f32 %v419, %v437
    %v439 = vpop.f32.mrf.mxu0
    %v440 = vadd.f32 %v421, %v439
    %441 = vmatmul.bf16.gmra.mxu0 %v369
    %v442 = vpop.f32.mrf.mxu0
    %v443 = vadd.f32 %v424, %v442
    %v444 = vpop.f32.mrf.mxu0
    %v445 = vadd.f32 %v426, %v444
    %446 = vdwg.mxu0
    %v447 = vld [vmem:[%s4] sm:$0xff]
    %v448 = vld [vmem:[%s4 + $0x8] sm:$0xff]
    %v449 = vld [vmem:[%s4 + $0x10] sm:$0xff]
    %v450 = vld [vmem:[%s4 + $0x18] sm:$0xff]
    %v451 = vld [vmem:[%s4 + $0x20] sm:$0xff]
    %v452 = vld [vmem:[%s4 + $0x28] sm:$0xff]
    %v453 = vld [vmem:[%s4 + $0x30] sm:$0xff]
    %v454 = vld [vmem:[%s4 + $0x38] sm:$0xff]
    %v455 = vld [vmem:[%s4 + $0x40] sm:$0xff]
    %v456 = vld [vmem:[%s4 + $0x48] sm:$0xff]
    %v457 = vld [vmem:[%s4 + $0x50] sm:$0xff]
    %v458 = vld [vmem:[%s4 + $0x58] sm:$0xff]
    %v459 = vld [vmem:[%s4 + $0x60] sm:$0xff]
    %v460 = vld [vmem:[%s4 + $0x68] sm:$0xff]
    %v461 = vld [vmem:[%s4 + $0x70] sm:$0xff]
    %v462 = vld [vmem:[%s4 + $0x78] sm:$0xff]
    %v463 = vld [vmem:[%s4 + $0x80] sm:$0xff]
    %v464 = vld [vmem:[%s4 + $0x88] sm:$0xff]
    %v465 = vld [vmem:[%s4 + $0x90] sm:$0xff]
    %v466 = vld [vmem:[%s4 + $0x98] sm:$0xff]
    %v467 = vld [vmem:[%s4 + $0xa0] sm:$0xff]
    %v468 = vld [vmem:[%s4 + $0xa8] sm:$0xff]
    %v469 = vld [vmem:[%s4 + $0xb0] sm:$0xff]
    %v470 = vld [vmem:[%s4 + $0xb8] sm:$0xff]
    %v471 = vld [vmem:[%s4 + $0xc0] sm:$0xff]
    %v472 = vld [vmem:[%s4 + $0xc8] sm:$0xff]
    %v473 = vld [vmem:[%s4 + $0xd0] sm:$0xff]
    %v474 = vld [vmem:[%s4 + $0xd8] sm:$0xff]
    %v475 = vld [vmem:[%s4 + $0xe0] sm:$0xff]
    %v476 = vld [vmem:[%s4 + $0xe8] sm:$0xff]
    %v477 = vld [vmem:[%s4 + $0xf0] sm:$0xff]
    %v478 = vld [vmem:[%s4 + $0xf8] sm:$0xff]
    %v479 = vld [vmem:[%s4 + $0x100] sm:$0xff]
    %v480 = vld [vmem:[%s4 + $0x108] sm:$0xff]
    %v481 = vld [vmem:[%s4 + $0x110] sm:$0xff]
    %v482 = vld [vmem:[%s4 + $0x118] sm:$0xff]
    %v483 = vld [vmem:[%s4 + $0x120] sm:$0xff]
    %v484 = vld [vmem:[%s4 + $0x128] sm:$0xff]
    %v485 = vld [vmem:[%s4 + $0x130] sm:$0xff]
    %v486 = vld [vmem:[%s4 + $0x138] sm:$0xff]
    %v487 = vld [vmem:[%s4 + $0x140] sm:$0xff]
    %v488 = vld [vmem:[%s4 + $0x148] sm:$0xff]
    %v489 = vld [vmem:[%s4 + $0x150] sm:$0xff]
    %v490 = vld [vmem:[%s4 + $0x158] sm:$0xff]
    %v491 = vld [vmem:[%s4 + $0x160] sm:$0xff]
    %v492 = vld [vmem:[%s4 + $0x168] sm:$0xff]
    %v493 = vld [vmem:[%s4 + $0x170] sm:$0xff]
    %v494 = vld [vmem:[%s4 + $0x178] sm:$0xff]
    %v495 = vld [vmem:[%s4 + $0x180] sm:$0xff]
    %v496 = vld [vmem:[%s4 + $0x188] sm:$0xff]
    %v497 = vld [vmem:[%s4 + $0x190] sm:$0xff]
    %v498 = vld [vmem:[%s4 + $0x198] sm:$0xff]
    %v499 = vld [vmem:[%s4 + $0x1a0] sm:$0xff]
    %v500 = vld [vmem:[%s4 + $0x1a8] sm:$0xff]
    %v501 = vld [vmem:[%s4 + $0x1b0] sm:$0xff]
    %v502 = vld [vmem:[%s4 + $0x1b8] sm:$0xff]
    %v503 = vld [vmem:[%s4 + $0x1c0] sm:$0xff]
    %v504 = vld [vmem:[%s4 + $0x1c8] sm:$0xff]
    %v505 = vld [vmem:[%s4 + $0x1d0] sm:$0xff]
    %v506 = vld [vmem:[%s4 + $0x1d8] sm:$0xff]
    %v507 = vld [vmem:[%s4 + $0x1e0] sm:$0xff]
    %v508 = vld [vmem:[%s4 + $0x1e8] sm:$0xff]
    %v509 = vld [vmem:[%s4 + $0x1f0] sm:$0xff]
    %v510 = vld [vmem:[%s4 + $0x1f8] sm:$0xff]
    %v511 = vld [vmem:[%s6] sm:$0x3]
    %v512 = vld [vmem:[%s7] sm:$0x3]
    %v513 = vadd.f32 %v400, %v402
    %v514 = vadd.f32 %v513, %v405
    %v515 = vadd.f32 %v514, %v407
    %v516 = vrot.slane %v515, 4
    %v517 = vadd.f32 %v515, %v516
    %v518 = vrot.slane %v517, 2
    %v519 = vadd.f32 %v517, %v518
    %v520 = vrot.slane %v519, 1
    %v521 = vadd.f32 %v519, %v520
    %v522 = vadd.f32 %v438, %v440
    %v523 = vadd.f32 %v522, %v443
    %v524 = vadd.f32 %v523, %v445
    %v525 = vrot.slane %v524, 4
    %v526 = vadd.f32 %v524, %v525
    %v527 = vrot.slane %v526, 2
    %v528 = vadd.f32 %v526, %v527
    %v529 = vrot.slane %v528, 1
    %v530 = vadd.f32 %v528, %v529
    %v531 = vadd.f32 %v521, 0.0
    %v532 = vadd.f32 %v530, 0.0
    %v533 = vmul.f32 %v400, %v400
    %v534 = vmul.f32 %v438, %v438
    %v535 = vmul.f32 %v402, %v402
    %v536 = vmul.f32 %v440, %v440
    %v537 = vmul.f32 %v405, %v405
    %v538 = vmul.f32 %v443, %v443
    %v539 = vmul.f32 %v407, %v407
    %v540 = vmul.f32 %v445, %v445
    %v541 = vadd.f32 %v533, %v535
    %v542 = vadd.f32 %v541, %v537
    %v543 = vadd.f32 %v542, %v539
    %v544 = vrot.slane %v543, 4
    %v545 = vadd.f32 %v543, %v544
    %v546 = vrot.slane %v545, 2
    %v547 = vadd.f32 %v545, %v546
    %v548 = vrot.slane %v547, 1
    %v549 = vadd.f32 %v547, %v548
    %v550 = vadd.f32 %v534, %v536
    %v551 = vadd.f32 %v550, %v538
    %v552 = vadd.f32 %v551, %v540
    %v553 = vrot.slane %v552, 4
    %v554 = vadd.f32 %v552, %v553
    %v555 = vrot.slane %v554, 2
    %v556 = vadd.f32 %v554, %v555
    %v557 = vrot.slane %v556, 1
    %v558 = vadd.f32 %v556, %v557
    %v559 = vadd.f32 %v549, 0.0
    %v560 = vadd.f32 %v558, 0.0
    %561 = vmatpush.msra.mxu0 %v477
    %562 = vmatpush.msra.mxu0 %v475
    %563 = vmatpush.msra.mxu0 %v473
    %564 = vmatpush.msra.mxu0 %v471
    %565 = vmatpush.msra.mxu0 %v469
    %566 = vmatpush.msra.mxu0 %v467
    %567 = vmatpush.msra.mxu0 %v465
    %568 = vmatpush.msra.mxu0 %v463
    %569 = vmatpush.msra.mxu0 %v461
    %570 = vmatpush.msra.mxu0 %v459
    %571 = vmatpush.msra.mxu0 %v457
    %572 = vmatpush.msra.mxu0 %v455
    %573 = vmatpush.msra.mxu0 %v453
    %574 = vmatpush.msra.mxu0 %v451
    %575 = vmatpush.msra.mxu0 %v449
    %576 = vmatpush.msra.mxu0 %v447
    %577 = vmatmul.f32.gmra.mxu0 %v531
    %v578 = vpop.f32.mrf.mxu0
    %v579 = vadd.f32 0.0, %v578
    %580 = vdwg.mxu0
    %581 = vmatpush.msra.mxu0 %v509
    %582 = vmatpush.msra.mxu0 %v507
    %583 = vmatpush.msra.mxu0 %v505
    %584 = vmatpush.msra.mxu0 %v503
    %585 = vmatpush.msra.mxu0 %v501
    %586 = vmatpush.msra.mxu0 %v499
    %587 = vmatpush.msra.mxu0 %v497
    %588 = vmatpush.msra.mxu0 %v495
    %589 = vmatpush.msra.mxu0 %v493
    %590 = vmatpush.msra.mxu0 %v491
    %591 = vmatpush.msra.mxu0 %v489
    %592 = vmatpush.msra.mxu0 %v487
    %593 = vmatpush.msra.mxu0 %v485
    %594 = vmatpush.msra.mxu0 %v483
    %595 = vmatpush.msra.mxu0 %v481
    %596 = vmatpush.msra.mxu0 %v479
    %597 = vmatmul.f32.gmra.mxu0 %v532
    %v598 = vpop.f32.mrf.mxu0
    %v599 = vadd.f32 %v579, %v598
    %600 = vdwg.mxu0
    %601 = vmatpush.msra.mxu0 %v478
    %602 = vmatpush.msra.mxu0 %v476
    %603 = vmatpush.msra.mxu0 %v474
    %604 = vmatpush.msra.mxu0 %v472
    %605 = vmatpush.msra.mxu0 %v470
    %606 = vmatpush.msra.mxu0 %v468
    %607 = vmatpush.msra.mxu0 %v466
    %608 = vmatpush.msra.mxu0 %v464
    %609 = vmatpush.msra.mxu0 %v462
    %610 = vmatpush.msra.mxu0 %v460
    %611 = vmatpush.msra.mxu0 %v458
    %612 = vmatpush.msra.mxu0 %v456
    %613 = vmatpush.msra.mxu0 %v454
    %614 = vmatpush.msra.mxu0 %v452
    %615 = vmatpush.msra.mxu0 %v450
    %616 = vmatpush.msra.mxu0 %v448
    %617 = vmatmul.f32.gmra.mxu0 %v531
    %v618 = vpop.f32.mrf.mxu0
    %v619 = vadd.f32 0.0, %v618
    %620 = vdwg.mxu0
    %621 = vmatpush.msra.mxu0 %v510
    %622 = vmatpush.msra.mxu0 %v508
    %623 = vmatpush.msra.mxu0 %v506
    %624 = vmatpush.msra.mxu0 %v504
    %625 = vmatpush.msra.mxu0 %v502
    %626 = vmatpush.msra.mxu0 %v500
    %627 = vmatpush.msra.mxu0 %v498
    %628 = vmatpush.msra.mxu0 %v496
    %629 = vmatpush.msra.mxu0 %v494
    %630 = vmatpush.msra.mxu0 %v492
    %631 = vmatpush.msra.mxu0 %v490
    %632 = vmatpush.msra.mxu0 %v488
    %633 = vmatpush.msra.mxu0 %v486
    %634 = vmatpush.msra.mxu0 %v484
    %635 = vmatpush.msra.mxu0 %v482
    %636 = vmatpush.msra.mxu0 %v480
    %637 = vmatmul.f32.gmra.mxu0 %v532
    %v638 = vpop.f32.mrf.mxu0
    %v639 = vadd.f32 %v619, %v638
    %640 = vdwg.mxu0
    %v641 = vmul.f32 %v599, 0.00048828125
    %v642 = vmul.f32 %v639, 0.00048828125
    %643 = vmatpush.msra.mxu0 %v477
    %644 = vmatpush.msra.mxu0 %v475
    %645 = vmatpush.msra.mxu0 %v473
    %646 = vmatpush.msra.mxu0 %v471
    %647 = vmatpush.msra.mxu0 %v469
    %648 = vmatpush.msra.mxu0 %v467
    %649 = vmatpush.msra.mxu0 %v465
    %650 = vmatpush.msra.mxu0 %v463
    %651 = vmatpush.msra.mxu0 %v461
    %652 = vmatpush.msra.mxu0 %v459
    %653 = vmatpush.msra.mxu0 %v457
    %654 = vmatpush.msra.mxu0 %v455
    %655 = vmatpush.msra.mxu0 %v453
    %656 = vmatpush.msra.mxu0 %v451
    %657 = vmatpush.msra.mxu0 %v449
    %658 = vmatpush.msra.mxu0 %v447
    %659 = vmatmul.f32.gmra.mxu0 %v559
    %v660 = vpop.f32.mrf.mxu0
    %v661 = vadd.f32 0.0, %v660
    %662 = vdwg.mxu0
    %663 = vmatpush.msra.mxu0 %v509
    %664 = vmatpush.msra.mxu0 %v507
    %665 = vmatpush.msra.mxu0 %v505
    %666 = vmatpush.msra.mxu0 %v503
    %667 = vmatpush.msra.mxu0 %v501
    %668 = vmatpush.msra.mxu0 %v499
    %669 = vmatpush.msra.mxu0 %v497
    %670 = vmatpush.msra.mxu0 %v495
    %671 = vmatpush.msra.mxu0 %v493
    %672 = vmatpush.msra.mxu0 %v491
    %673 = vmatpush.msra.mxu0 %v489
    %674 = vmatpush.msra.mxu0 %v487
    %675 = vmatpush.msra.mxu0 %v485
    %676 = vmatpush.msra.mxu0 %v483
    %677 = vmatpush.msra.mxu0 %v481
    %678 = vmatpush.msra.mxu0 %v479
    %679 = vmatmul.f32.gmra.mxu0 %v560
    %v680 = vpop.f32.mrf.mxu0
    %v681 = vadd.f32 %v661, %v680
    %682 = vdwg.mxu0
    %683 = vmatpush.msra.mxu0 %v478
    %684 = vmatpush.msra.mxu0 %v476
    %685 = vmatpush.msra.mxu0 %v474
    %686 = vmatpush.msra.mxu0 %v472
    %687 = vmatpush.msra.mxu0 %v470
    %688 = vmatpush.msra.mxu0 %v468
    %689 = vmatpush.msra.mxu0 %v466
    %690 = vmatpush.msra.mxu0 %v464
    %691 = vmatpush.msra.mxu0 %v462
    %692 = vmatpush.msra.mxu0 %v460
    %693 = vmatpush.msra.mxu0 %v458
    %694 = vmatpush.msra.mxu0 %v456
    %695 = vmatpush.msra.mxu0 %v454
    %696 = vmatpush.msra.mxu0 %v452
    %697 = vmatpush.msra.mxu0 %v450
    %698 = vmatpush.msra.mxu0 %v448
    %699 = vmatmul.f32.gmra.mxu0 %v559
    %v700 = vpop.f32.mrf.mxu0
    %v701 = vadd.f32 0.0, %v700
    %702 = vdwg.mxu0
    %703 = vmatpush.msra.mxu0 %v510
    %704 = vmatpush.msra.mxu0 %v508
    %705 = vmatpush.msra.mxu0 %v506
    %706 = vmatpush.msra.mxu0 %v504
    %707 = vmatpush.msra.mxu0 %v502
    %708 = vmatpush.msra.mxu0 %v500
    %709 = vmatpush.msra.mxu0 %v498
    %710 = vmatpush.msra.mxu0 %v496
    %711 = vmatpush.msra.mxu0 %v494
    %712 = vmatpush.msra.mxu0 %v492
    %713 = vmatpush.msra.mxu0 %v490
    %714 = vmatpush.msra.mxu0 %v488
    %715 = vmatpush.msra.mxu0 %v486
    %716 = vmatpush.msra.mxu0 %v484
    %717 = vmatpush.msra.mxu0 %v482
    %718 = vmatpush.msra.mxu0 %v480
    %719 = vmatmul.f32.gmra.mxu0 %v560
    %v720 = vpop.f32.mrf.mxu0
    %v721 = vadd.f32 %v701, %v720
    %722 = vdwg.mxu0
    %v723 = vmul.f32 %v681, 0.00048828125
    %v724 = vmul.f32 %v721, 0.00048828125
    %v725 = vmul.f32 %v641, %v641
    %v726 = vmul.f32 %v642, %v642
    %v727 = vsub.f32 %v723, %v725
    %v728 = vsub.f32 %v724, %v726
    %v729 = vadd.f32 %v727, 1e-05
    %v730 = vadd.f32 %v728, 1e-05
    %v731 = vrsqrt.pop %v729
    %v732 = vmul.f32 %v731, %v729
    %v733 = vmul.f32 %v732, %v731
    %v734 = vmul.f32 0.5, %v733
    %v735 = vsub.f32 1.5, %v734
    %v736 = vmul.f32 %v731, %v735
    %vm737 = vweird.f32 %v729
    %vm738 = vweird.f32 %v731
    %vm739 = vmor %vm737, %vm738
    %v740 = vsel %vm739, %v731, %v736
    %v741 = vrsqrt.pop %v730
    %v742 = vmul.f32 %v741, %v730
    %v743 = vmul.f32 %v742, %v741
    %v744 = vmul.f32 0.5, %v743
    %v745 = vsub.f32 1.5, %v744
    %v746 = vmul.f32 %v741, %v745
    %vm747 = vweird.f32 %v730
    %vm748 = vweird.f32 %v741
    %vm749 = vmor %vm747, %vm748
    %v750 = vsel %vm749, %v741, %v746
    %v753 = vrot.slane %v750, 7
    %vm754 = vcmask 1040384
    %v755 = vsel %vm754, %v740, %v753
    %v757 = vmul.f32 %v511, %v755
    %v759 = vperm.slane %v757, 0
    %v760 = vperm.slane %v757, 1
    %v763 = vmul.f32 %v641, %v759
    %v764 = vmul.f32 %v642, %v760
    %v767 = vrot.slane %v764, 7
    %v768 = vsel %vm754, %v763, %v767
    %v770 = vsub.f32 %v512, %v768
    %v771 = vmul.f32 %v400, %v759
    %v772 = vmul.f32 %v438, %v760
    %v773 = vmul.f32 %v402, %v759
    %v774 = vmul.f32 %v440, %v760
    %v775 = vmul.f32 %v405, %v759
    %v776 = vmul.f32 %v443, %v760
    %v777 = vmul.f32 %v407, %v759
    %v778 = vmul.f32 %v445, %v760
    %v780 = vperm.slane %v770, 0
    %v781 = vperm.slane %v770, 1
    %v784 = vadd.f32 %v771, %v780
    %v785 = vadd.f32 %v772, %v781
    %v786 = vadd.f32 %v773, %v780
    %v787 = vadd.f32 %v774, %v781
    %v788 = vadd.f32 %v775, %v780
    %v789 = vadd.f32 %v776, %v781
    %v790 = vadd.f32 %v777, %v780
    %v791 = vadd.f32 %v778, %v781
    %v792 = vmax.f32 %v784, 0.0
    %v793 = vmax.f32 %v785, 0.0
    %v794 = vmax.f32 %v786, 0.0
    %v795 = vmax.f32 %v787, 0.0
    %v796 = vmax.f32 %v788, 0.0
    %v797 = vmax.f32 %v789, 0.0
    %v798 = vmax.f32 %v790, 0.0
    %v799 = vmax.f32 %v791, 0.0
    %v800 = vrot.slane %v793, 7
    %v801 = vrot.slane %v795, 7
    %v802 = vrot.slane %v797, 7
    %v803 = vrot.slane %v799, 7
    %v804 = vsel %vm152, %v802, %v803
    %v805 = vsel %vm152, %v801, %v802
    %v806 = vsel %vm152, %v800, %v801
    %v807 = vsel %vm152, %v803, %v800
    %v808 = vsel %vm161, %v793, %v807
    %v809 = vsel %vm162, %v795, %v806
    %v810 = vsel %vm163, %v797, %v805
    %v811 = vsel %vm164, %v799, %v804
    %v812 = vpack.c.bf16 %v809, %v808
    %v813 = vpack.c.bf16 %v794, %v792
    %v814 = vpack.c.bf16 %v795, %v793
    %v815 = vpack.c.bf16 %v811, %v810
    %v816 = vpack.c.bf16 %v798, %v796
    %v817 = vpack.c.bf16 %v799, %v797
    %v818 = vrot.slane %v792, 1
    %v819 = vrot.slane %v794, 1
    %v820 = vrot.slane %v796, 1
    %v821 = vrot.slane %v798, 1
    %v822 = vsel %vm173, %v820, %v821
    %v823 = vsel %vm173, %v819, %v820
    %v824 = vsel %vm173, %v818, %v819
    %v825 = vsel %vm173, %v821, %v818
    %v826 = vsel %vm182, %v792, %v824
    %v827 = vsel %vm183, %v794, %v823
    %v828 = vsel %vm184, %v796, %v822
    %v829 = vsel %vm185, %v798, %v825
    %v830 = vpack.c.bf16 %v827, %v826
    %v831 = vpack.c.bf16 %v829, %v828
    %v832 = vld [vmem:[#allocation4] sm:$0xf]
    %v833 = vld [vmem:[#allocation4 + $0x4] sm:$0xf]
    %v834 = vld [vmem:[#allocation4 + $0x8] sm:$0xf]
    %v835 = vld [vmem:[#allocation4 + $0xc] sm:$0xf]
    %v836 = vld [vmem:[#allocation4 + $0x10] sm:$0xf]
    %v837 = vld [vmem:[#allocation4 + $0x14] sm:$0xf]
    %v838 = vld [vmem:[#allocation4 + $0x18] sm:$0xf]
    %v839 = vld [vmem:[#allocation4 + $0x1c] sm:$0xf]
    %v840 = vld [vmem:[#allocation4 + $0x20] sm:$0xf]
    %v841 = vld [vmem:[#allocation4 + $0x24] sm:$0xf]
    %v842 = vld [vmem:[#allocation4 + $0x28] sm:$0xf]
    %v843 = vld [vmem:[#allocation4 + $0x2c] sm:$0xf]
    %v844 = vld [vmem:[#allocation4 + $0x30] sm:$0xf]
    %v845 = vld [vmem:[#allocation4 + $0x34] sm:$0xf]
    %v846 = vld [vmem:[#allocation4 + $0x38] sm:$0xf]
    %v847 = vld [vmem:[#allocation4 + $0x3c] sm:$0xf]
    %v848 = vld [vmem:[#allocation4 + $0x40] sm:$0xf]
    %v849 = vld [vmem:[#allocation4 + $0x44] sm:$0xf]
    %v850 = vld [vmem:[#allocation4 + $0x48] sm:$0xf]
    %v851 = vld [vmem:[#allocation4 + $0x4c] sm:$0xf]
    %v852 = vld [vmem:[#allocation4 + $0x50] sm:$0xf]
    %v853 = vld [vmem:[#allocation4 + $0x54] sm:$0xf]
    %v854 = vld [vmem:[#allocation4 + $0x58] sm:$0xf]
    %v855 = vld [vmem:[#allocation4 + $0x5c] sm:$0xf]
    %v856 = vld [vmem:[#allocation4 + $0x60] sm:$0xf]
    %v857 = vld [vmem:[#allocation4 + $0x64] sm:$0xf]
    %v858 = vld [vmem:[#allocation4 + $0x68] sm:$0xf]
    %v859 = vld [vmem:[#allocation4 + $0x6c] sm:$0xf]
    %v860 = vld [vmem:[#allocation4 + $0x70] sm:$0xf]
    %v861 = vld [vmem:[#allocation4 + $0x74] sm:$0xf]
    %v862 = vld [vmem:[#allocation4 + $0x78] sm:$0xf]
    %v863 = vld [vmem:[#allocation4 + $0x7c] sm:$0xf]
    %v864 = vld [vmem:[#allocation4 + $0x80] sm:$0xf]
    %v865 = vld [vmem:[#allocation4 + $0x84] sm:$0xf]
    %v866 = vld [vmem:[#allocation4 + $0x88] sm:$0xf]
    %v867 = vld [vmem:[#allocation4 + $0x8c] sm:$0xf]
    %v868 = vld [vmem:[#allocation4 + $0x90] sm:$0xf]
    %v869 = vld [vmem:[#allocation4 + $0x94] sm:$0xf]
    %v870 = vld [vmem:[#allocation4 + $0x98] sm:$0xf]
    %v871 = vld [vmem:[#allocation4 + $0x9c] sm:$0xf]
    %v872 = vld [vmem:[#allocation4 + $0xa0] sm:$0xf]
    %v873 = vld [vmem:[#allocation4 + $0xa4] sm:$0xf]
    %v874 = vld [vmem:[#allocation4 + $0xa8] sm:$0xf]
    %v875 = vld [vmem:[#allocation4 + $0xac] sm:$0xf]
    %v876 = vld [vmem:[#allocation4 + $0xb0] sm:$0xf]
    %v877 = vld [vmem:[#allocation4 + $0xb4] sm:$0xf]
    %v878 = vld [vmem:[#allocation4 + $0xb8] sm:$0xf]
    %v879 = vld [vmem:[#allocation4 + $0xbc] sm:$0xf]
    %v928 = vunpack.c.l.b16 %v832
    %v929 = vunpack.c.l.b16 %v833
    %v930 = vunpack.c.l.b16 %v834
    %v931 = vunpack.c.l.b16 %v835
    %v932 = vunpack.c.l.b16 %v836
    %v933 = vunpack.c.l.b16 %v837
    %v934 = vunpack.c.l.b16 %v838
    %v935 = vunpack.c.l.b16 %v839
    %v936 = vunpack.c.l.b16 %v840
    %v937 = vunpack.c.l.b16 %v841
    %v938 = vunpack.c.l.b16 %v842
    %v939 = vunpack.c.l.b16 %v843
    %v940 = vunpack.c.l.b16 %v844
    %v941 = vunpack.c.l.b16 %v845
    %v942 = vunpack.c.l.b16 %v846
    %v943 = vunpack.c.l.b16 %v847
    %v944 = vunpack.c.l.b16 %v848
    %v945 = vunpack.c.l.b16 %v849
    %v946 = vunpack.c.l.b16 %v850
    %v947 = vunpack.c.l.b16 %v851
    %v948 = vunpack.c.l.b16 %v852
    %v949 = vunpack.c.l.b16 %v853
    %v950 = vunpack.c.l.b16 %v854
    %v951 = vunpack.c.l.b16 %v855
    %v952 = vunpack.c.l.b16 %v856
    %v953 = vunpack.c.l.b16 %v857
    %v954 = vunpack.c.l.b16 %v858
    %v955 = vunpack.c.l.b16 %v859
    %v956 = vunpack.c.l.b16 %v860
    %v957 = vunpack.c.l.b16 %v861
    %v958 = vunpack.c.l.b16 %v862
    %v959 = vunpack.c.l.b16 %v863
    %v960 = vunpack.c.l.b16 %v864
    %v961 = vunpack.c.l.b16 %v865
    %v962 = vunpack.c.l.b16 %v866
    %v963 = vunpack.c.l.b16 %v867
    %v964 = vunpack.c.l.b16 %v868
    %v965 = vunpack.c.l.b16 %v869
    %v966 = vunpack.c.l.b16 %v870
    %v967 = vunpack.c.l.b16 %v871
    %v968 = vunpack.c.l.b16 %v872
    %v969 = vunpack.c.l.b16 %v873
    %v970 = vunpack.c.l.b16 %v874
    %v971 = vunpack.c.l.b16 %v875
    %v972 = vunpack.c.l.b16 %v876
    %v973 = vunpack.c.l.b16 %v877
    %v974 = vunpack.c.l.b16 %v878
    %v975 = vunpack.c.l.b16 %v879
    %v976 = vpack.c.b16 %v929, %v928
    %v977 = vpack.c.b16 %v931, %v930
    %v978 = vpack.c.b16 %v933, %v932
    %v979 = vpack.c.b16 %v935, %v934
    %v980 = vpack.c.b16 %v937, %v936
    %v981 = vpack.c.b16 %v939, %v938
    %v982 = vpack.c.b16 %v941, %v940
    %v983 = vpack.c.b16 %v943, %v942
    %v984 = vpack.c.b16 %v945, %v944
    %v985 = vpack.c.b16 %v947, %v946
    %v986 = vpack.c.b16 %v949, %v948
    %v987 = vpack.c.b16 %v951, %v950
    %v988 = vpack.c.b16 %v953, %v952
    %v989 = vpack.c.b16 %v955, %v954
    %v990 = vpack.c.b16 %v957, %v956
    %v991 = vpack.c.b16 %v959, %v958
    %v992 = vpack.c.b16 %v961, %v960
    %v993 = vpack.c.b16 %v963, %v962
    %v994 = vpack.c.b16 %v965, %v964
    %v995 = vpack.c.b16 %v967, %v966
    %v996 = vpack.c.b16 %v969, %v968
    %v997 = vpack.c.b16 %v971, %v970
    %v998 = vpack.c.b16 %v973, %v972
    %v999 = vpack.c.b16 %v975, %v974
    %1024 = vmatpush.bf16.msra.mxu0 %v983
    %1025 = vmatpush.bf16.msra.mxu0 %v982
    %1026 = vmatpush.bf16.msra.mxu0 %v981
    %1027 = vmatpush.bf16.msra.mxu0 %v980
    %1028 = vmatpush.bf16.msra.mxu0 %v979
    %1029 = vmatpush.bf16.msra.mxu0 %v978
    %1030 = vmatpush.bf16.msra.mxu0 %v977
    %1031 = vmatpush.bf16.msra.mxu0 %v976
    %1032 = vmatmul.bf16.gmra.mxu0 %v812
    %v1033 = vpop.f32.mrf.mxu0
    %v1034 = vadd.f32 0.0, %v1033
    %v1035 = vpop.f32.mrf.mxu0
    %v1036 = vadd.f32 0.0, %v1035
    %1037 = vmatmul.bf16.gmra.mxu0 %v815
    %v1038 = vpop.f32.mrf.mxu0
    %v1039 = vadd.f32 0.0, %v1038
    %v1040 = vpop.f32.mrf.mxu0
    %v1041 = vadd.f32 0.0, %v1040
    %1042 = vdwg.mxu0
    %1043 = vmatpush.bf16.msra.mxu0 %v991
    %1044 = vmatpush.bf16.msra.mxu0 %v990
    %1045 = vmatpush.bf16.msra.mxu0 %v989
    %1046 = vmatpush.bf16.msra.mxu0 %v988
    %1047 = vmatpush.bf16.msra.mxu0 %v987
    %1048 = vmatpush.bf16.msra.mxu0 %v986
    %1049 = vmatpush.bf16.msra.mxu0 %v985
    %1050 = vmatpush.bf16.msra.mxu0 %v984
    %1051 = vmatmul.bf16.gmra.mxu0 %v813
    %v1052 = vpop.f32.mrf.mxu0
    %v1053 = vadd.f32 %v1034, %v1052
    %v1054 = vpop.f32.mrf.mxu0
    %v1055 = vadd.f32 %v1036, %v1054
    %1056 = vmatmul.bf16.gmra.mxu0 %v816
    %v1057 = vpop.f32.mrf.mxu0
    %v1058 = vadd.f32 %v1039, %v1057
    %v1059 = vpop.f32.mrf.mxu0
    %v1060 = vadd.f32 %v1041, %v1059
    %1061 = vdwg.mxu0
    %1062 = vmatpush.bf16.msra.mxu0 %v999
    %1063 = vmatpush.bf16.msra.mxu0 %v998
    %1064 = vmatpush.bf16.msra.mxu0 %v997
    %1065 = vmatpush.bf16.msra.mxu0 %v996
    %1066 = vmatpush.bf16.msra.mxu0 %v995
    %1067 = vmatpush.bf16.msra.mxu0 %v994
    %1068 = vmatpush.bf16.msra.mxu0 %v993
    %1069 = vmatpush.bf16.msra.mxu0 %v992
    %1070 = vmatmul.bf16.gmra.mxu0 %v814
    %v1071 = vpop.f32.mrf.mxu0
    %v1072 = vadd.f32 %v1053, %v1071
    %v1073 = vpop.f32.mrf.mxu0
    %v1074 = vadd.f32 %v1055, %v1073
    %1075 = vmatmul.bf16.gmra.mxu0 %v817
    %v1076 = vpop.f32.mrf.mxu0
    %v1077 = vadd.f32 %v1058, %v1076
    %v1078 = vpop.f32.mrf.mxu0
    %v1079 = vadd.f32 %v1060, %v1078
    %1080 = vdwg.mxu0
    %1081 = vmatpush.bf16.msra.mxu0 %v983
    %1082 = vmatpush.bf16.msra.mxu0 %v982
    %1083 = vmatpush.bf16.msra.mxu0 %v981
    %1084 = vmatpush.bf16.msra.mxu0 %v980
    %1085 = vmatpush.bf16.msra.mxu0 %v979
    %1086 = vmatpush.bf16.msra.mxu0 %v978
    %1087 = vmatpush.bf16.msra.mxu0 %v977
    %1088 = vmatpush.bf16.msra.mxu0 %v976
    %1089 = vmatmul.bf16.gmra.mxu0 %v813
    %v1090 = vpop.f32.mrf.mxu0
    %v1091 = vadd.f32 0.0, %v1090
    %v1092 = vpop.f32.mrf.mxu0
    %v1093 = vadd.f32 0.0, %v1092
    %1094 = vmatmul.bf16.gmra.mxu0 %v816
    %v1095 = vpop.f32.mrf.mxu0
    %v1096 = vadd.f32 0.0, %v1095
    %v1097 = vpop.f32.mrf.mxu0
    %v1098 = vadd.f32 0.0, %v1097
    %1099 = vdwg.mxu0
    %1100 = vmatpush.bf16.msra.mxu0 %v991
    %1101 = vmatpush.bf16.msra.mxu0 %v990
    %1102 = vmatpush.bf16.msra.mxu0 %v989
    %1103 = vmatpush.bf16.msra.mxu0 %v988
    %1104 = vmatpush.bf16.msra.mxu0 %v987
    %1105 = vmatpush.bf16.msra.mxu0 %v986
    %1106 = vmatpush.bf16.msra.mxu0 %v985
    %1107 = vmatpush.bf16.msra.mxu0 %v984
    %1108 = vmatmul.bf16.gmra.mxu0 %v814
    %v1109 = vpop.f32.mrf.mxu0
    %v1110 = vadd.f32 %v1091, %v1109
    %v1111 = vpop.f32.mrf.mxu0
    %v1112 = vadd.f32 %v1093, %v1111
    %1113 = vmatmul.bf16.gmra.mxu0 %v817
    %v1114 = vpop.f32.mrf.mxu0
    %v1115 = vadd.f32 %v1096, %v1114
    %v1116 = vpop.f32.mrf.mxu0
    %v1117 = vadd.f32 %v1098, %v1116
    %1118 = vdwg.mxu0
    %1119 = vmatpush.bf16.msra.mxu0 %v999
    %1120 = vmatpush.bf16.msra.mxu0 %v998
    %1121 = vmatpush.bf16.msra.mxu0 %v997
    %1122 = vmatpush.bf16.msra.mxu0 %v996
    %1123 = vmatpush.bf16.msra.mxu0 %v995
    %1124 = vmatpush.bf16.msra.mxu0 %v994
    %1125 = vmatpush.bf16.msra.mxu0 %v993
    %1126 = vmatpush.bf16.msra.mxu0 %v992
    %1127 = vmatmul.bf16.gmra.mxu0 %v830
    %v1128 = vpop.f32.mrf.mxu0
    %v1129 = vadd.f32 %v1110, %v1128
    %v1130 = vpop.f32.mrf.mxu0
    %v1131 = vadd.f32 %v1112, %v1130
    %1132 = vmatmul.bf16.gmra.mxu0 %v831
    %v1133 = vpop.f32.mrf.mxu0
    %v1134 = vadd.f32 %v1115, %v1133
    %v1135 = vpop.f32.mrf.mxu0
    %v1136 = vadd.f32 %v1117, %v1135
    %1137 = vdwg.mxu0
    %v1138 = vld [vmem:[#allocation6] sm:$0xff]
    %v1139 = vld [vmem:[#allocation6 + $0x8] sm:$0xff]
    %v1140 = vld [vmem:[#allocation6 + $0x10] sm:$0xff]
    %v1141 = vld [vmem:[#allocation6 + $0x18] sm:$0xff]
    %v1142 = vld [vmem:[#allocation6 + $0x20] sm:$0xff]
    %v1143 = vld [vmem:[#allocation6 + $0x28] sm:$0xff]
    %v1144 = vld [vmem:[#allocation6 + $0x30] sm:$0xff]
    %v1145 = vld [vmem:[#allocation6 + $0x38] sm:$0xff]
    %v1146 = vld [vmem:[#allocation6 + $0x40] sm:$0xff]
    %v1147 = vld [vmem:[#allocation6 + $0x48] sm:$0xff]
    %v1148 = vld [vmem:[#allocation6 + $0x50] sm:$0xff]
    %v1149 = vld [vmem:[#allocation6 + $0x58] sm:$0xff]
    %v1150 = vld [vmem:[#allocation6 + $0x60] sm:$0xff]
    %v1151 = vld [vmem:[#allocation6 + $0x68] sm:$0xff]
    %v1152 = vld [vmem:[#allocation6 + $0x70] sm:$0xff]
    %v1153 = vld [vmem:[#allocation6 + $0x78] sm:$0xff]
    %v1154 = vld [vmem:[%s8] sm:$0x1]
    %v1155 = vld [vmem:[%s9] sm:$0x1]
    %v1156 = vadd.f32 %v1072, %v1074
    %v1157 = vadd.f32 %v1156, %v1077
    %v1158 = vadd.f32 %v1157, %v1079
    %v1159 = vrot.slane %v1158, 4
    %v1160 = vadd.f32 %v1158, %v1159
    %v1161 = vrot.slane %v1160, 2
    %v1162 = vadd.f32 %v1160, %v1161
    %v1163 = vrot.slane %v1162, 1
    %v1164 = vadd.f32 %v1162, %v1163
    %v1165 = vadd.f32 %v1164, 0.0
    %v1166 = vmul.f32 %v1072, %v1072
    %v1167 = vmul.f32 %v1074, %v1074
    %v1168 = vmul.f32 %v1077, %v1077
    %v1169 = vmul.f32 %v1079, %v1079
    %v1170 = vadd.f32 %v1166, %v1167
    %v1171 = vadd.f32 %v1170, %v1168
    %v1172 = vadd.f32 %v1171, %v1169
    %v1173 = vrot.slane %v1172, 4
    %v1174 = vadd.f32 %v1172, %v1173
    %v1175 = vrot.slane %v1174, 2
    %v1176 = vadd.f32 %v1174, %v1175
    %v1177 = vrot.slane %v1176, 1
    %v1178 = vadd.f32 %v1176, %v1177
    %v1179 = vadd.f32 %v1178, 0.0
    %v1180 = vadd.f32 %v1129, %v1131
    %v1181 = vadd.f32 %v1180, %v1134
    %v1182 = vadd.f32 %v1181, %v1136
    %v1183 = vrot.slane %v1182, 4
    %v1184 = vadd.f32 %v1182, %v1183
    %v1185 = vrot.slane %v1184, 2
    %v1186 = vadd.f32 %v1184, %v1185
    %v1187 = vrot.slane %v1186, 1
    %v1188 = vadd.f32 %v1186, %v1187
    %v1189 = vadd.f32 %v1165, %v1188
    %v1190 = vmul.f32 %v1129, %v1129
    %v1191 = vmul.f32 %v1131, %v1131
    %v1192 = vmul.f32 %v1134, %v1134
    %v1193 = vmul.f32 %v1136, %v1136
    %v1194 = vadd.f32 %v1190, %v1191
    %v1195 = vadd.f32 %v1194, %v1192
    %v1196 = vadd.f32 %v1195, %v1193
    %v1197 = vrot.slane %v1196, 4
    %v1198 = vadd.f32 %v1196, %v1197
    %v1199 = vrot.slane %v1198, 2
    %v1200 = vadd.f32 %v1198, %v1199
    %v1201 = vrot.slane %v1200, 1
    %v1202 = vadd.f32 %v1200, %v1201
    %v1203 = vadd.f32 %v1179, %v1202
    %1204 = vmatpush.msra.mxu0 %v1153
    %1205 = vmatpush.msra.mxu0 %v1152
    %1206 = vmatpush.msra.mxu0 %v1151
    %1207 = vmatpush.msra.mxu0 %v1150
    %1208 = vmatpush.msra.mxu0 %v1149
    %1209 = vmatpush.msra.mxu0 %v1148
    %1210 = vmatpush.msra.mxu0 %v1147
    %1211 = vmatpush.msra.mxu0 %v1146
    %1212 = vmatpush.msra.mxu0 %v1145
    %1213 = vmatpush.msra.mxu0 %v1144
    %1214 = vmatpush.msra.mxu0 %v1143
    %1215 = vmatpush.msra.mxu0 %v1142
    %1216 = vmatpush.msra.mxu0 %v1141
    %1217 = vmatpush.msra.mxu0 %v1140
    %1218 = vmatpush.msra.mxu0 %v1139
    %1219 = vmatpush.msra.mxu0 %v1138
    %1220 = vmatmul.f32.gmra.mxu0 %v1189
    %v1221 = vpop.f32.mrf.mxu0
    %v1222 = vadd.f32 0.0, %v1221
    %1223 = vdwg.mxu0
    %v1224 = vmul.f32 %v1222, 0.00048828125
    %1225 = vmatpush.msra.mxu0 %v1153
    %1226 = vmatpush.msra.mxu0 %v1152
    %1227 = vmatpush.msra.mxu0 %v1151
    %1228 = vmatpush.msra.mxu0 %v1150
    %1229 = vmatpush.msra.mxu0 %v1149
    %1230 = vmatpush.msra.mxu0 %v1148
    %1231 = vmatpush.msra.mxu0 %v1147
    %1232 = vmatpush.msra.mxu0 %v1146
    %1233 = vmatpush.msra.mxu0 %v1145
    %1234 = vmatpush.msra.mxu0 %v1144
    %1235 = vmatpush.msra.mxu0 %v1143
    %1236 = vmatpush.msra.mxu0 %v1142
    %1237 = vmatpush.msra.mxu0 %v1141
    %1238 = vmatpush.msra.mxu0 %v1140
    %1239 = vmatpush.msra.mxu0 %v1139
    %1240 = vmatpush.msra.mxu0 %v1138
    %1241 = vmatmul.f32.gmra.mxu0 %v1203
    %v1242 = vpop.f32.mrf.mxu0
    %v1243 = vadd.f32 0.0, %v1242
    %1244 = vdwg.mxu0
    %v1245 = vmul.f32 %v1243, 0.00048828125
    %v1246 = vmul.f32 %v1224, %v1224
    %v1247 = vsub.f32 %v1245, %v1246
    %v1248 = vadd.f32 %v1247, 1e-05
    %v1249 = vrsqrt.pop %v1248
    %v1250 = vmul.f32 %v1249, %v1248
    %v1251 = vmul.f32 %v1250, %v1249
    %v1252 = vmul.f32 0.5, %v1251
    %v1253 = vsub.f32 1.5, %v1252
    %v1254 = vmul.f32 %v1249, %v1253
    %vm1255 = vweird.f32 %v1248
    %vm1256 = vweird.f32 %v1249
    %vm1257 = vmor %vm1255, %vm1256
    %v1258 = vsel %vm1257, %v1249, %v1254
    %v1259 = vmul.f32 %v1154, %v1258
    %v1260 = vmul.f32 %v1224, %v1259
    %v1261 = vsub.f32 %v1155, %v1260
    %v1263 = vperm.slane %v1259, 0
    %v1265 = vmul.f32 %v1072, %v1263
    %v1266 = vmul.f32 %v1074, %v1263
    %v1267 = vmul.f32 %v1077, %v1263
    %v1268 = vmul.f32 %v1079, %v1263
    %v1270 = vperm.slane %v1261, 0
    %v1272 = vadd.f32 %v1265, %v1270
    %v1273 = vadd.f32 %v1266, %v1270
    %v1274 = vadd.f32 %v1267, %v1270
    %v1275 = vadd.f32 %v1268, %v1270
    %v1276 = vmax.f32 %v1272, 0.0
    %v1277 = vmax.f32 %v1273, 0.0
    %v1278 = vmax.f32 %v1274, 0.0
    %v1279 = vmax.f32 %v1275, 0.0
    %v1280 = vmul.f32 %v1129, %v1263
    %v1281 = vmul.f32 %v1131, %v1263
    %v1282 = vmul.f32 %v1134, %v1263
    %v1283 = vmul.f32 %v1136, %v1263
    %v1284 = vadd.f32 %v1280, %v1270
    %v1285 = vadd.f32 %v1281, %v1270
    %v1286 = vadd.f32 %v1282, %v1270
    %v1287 = vadd.f32 %v1283, %v1270
    %v1288 = vmax.f32 %v1284, 0.0
    %v1289 = vmax.f32 %v1285, 0.0
    %v1290 = vmax.f32 %v1286, 0.0
    %v1291 = vmax.f32 %v1287, 0.0
    %1292 = vst [vmem:[%s10] sm:$0xff] %v1276
    %1293 = vst [vmem:[%s10 + $0x10] sm:$0xff] %v1277
    %1294 = vst [vmem:[%s10 + $0x20] sm:$0xff] %v1278
    %1295 = vst [vmem:[%s10 + $0x30] sm:$0xff] %v1279
    %1296 = vst [vmem:[%s10 + $0x8] sm:$0xff] %v1288
    %1297 = vst [vmem:[%s10 + $0x18] sm:$0xff] %v1289
    %1298 = vst [vmem:[%s10 + $0x28] sm:$0xff] %v1290
    %1299 = vst [vmem:[%s10 + $0x38] sm:$0xff] %v1291
    // Predicated region
    $region54: #{upsample_forward.1} parent=1 // pred_check
      _
    $region55: #{upsample_forward.1} parent=1 // pred_check_branch
      %1301 = sbr.rel (0) target = $region57
    $region56: #{upsample_forward.1} parent=1 // pred_region
      _
    $region57: #{upsample_forward.1} parent=1 // pred_fallthru
      _
    // Predicated region
    $region58: #{upsample_forward.1} parent=1 // pred_check
      _
    $region59: #{upsample_forward.1} parent=1 // pred_check_branch
      %1303 = sbr.rel (0) target = $region61
    $region60: #{upsample_forward.1} parent=1 // pred_region
      _
    $region61: #{upsample_forward.1} parent=1 // pred_fallthru
      _
    %1304 = vsyncpa [#allocation3], 1
    %1305 = vsyncpa [#allocation5], 1

</llo_original>
